<compile_context>
chip_gen: v6e
topology: v6e:2x2x1
jax: 0.10.0
libtpu: 0.0.40
codegen_flags: <defaults>
</compile_context>

<pallas_src>
import functools

import jax
import jax.numpy as jnp
from jax import lax
from jax.experimental import pallas as pl
from jax.experimental.pallas import tpu as pltpu


# ---------------------------------------------------------------------------
# Pallas kernels (hot path): fused GEMM + bias + PReLU (+ residual)
# ---------------------------------------------------------------------------
def _gemm_bias_prelu_kernel(a_ref, w_ref, b_ref, alpha_ref, o_ref):
    acc = jnp.dot(a_ref[...], w_ref[...], preferred_element_type=jnp.float32)
    acc = acc + b_ref[...]                       # (1, Npad) broadcasts over rows
    alpha = alpha_ref[0]                         # PReLU slope, scalar from SMEM
    o_ref[...] = jnp.where(acc >= 0.0, acc, alpha * acc).astype(o_ref.dtype)


def _gemm_bias_prelu_res_kernel(a_ref, w_ref, b_ref, alpha_ref, r_ref, o_ref,
                                *, res_sign):
    acc = jnp.dot(a_ref[...], w_ref[...], preferred_element_type=jnp.float32)
    acc = acc + b_ref[...]
    alpha = alpha_ref[0]
    y = jnp.where(acc >= 0.0, acc, alpha * acc)
    r = r_ref[...].astype(jnp.float32)           # residual arrives as bf16
    o_ref[...] = (y + res_sign * r).astype(o_ref.dtype)


def _round_up(x, m):
    return -(-x // m) * m


def _choose_tm(M, Kpad, Npad, has_res, out_bytes):
    """Row tile from the full double-buffered VMEM working set.

    Budget is conservative (28 MiB) so it fits v7x's 64 MiB physical VMEM with
    headroom; v5e/v6e (128 MiB) trivially accommodate it.  Rows are 16-aligned
    and the step count is kept even so both v7x TensorCores get equal work.
    """
    budget = 28 << 20
    m_al = _round_up(M, 16)
    per_row = 2 * (2 * Kpad) + 2 * out_bytes * Npad        # A + out (x2 bufs)
    if has_res:
        per_row += 2 * 2 * Npad                            # bf16 residual
    fixed = 2 * (2 * Kpad * Npad + 4 * Npad)               # W + bias (x2 bufs)
    cap = max(16, ((budget - fixed) // per_row) // 16 * 16)
    tm = min(1024, m_al, cap)
    steps = pl.cdiv(m_al, tm)
    if steps == 1 and m_al >= 32:
        steps = 2                      # give both v7x TensorCores work
    elif steps > 1 and steps % 2 == 1:
        steps += 1                     # even step count for megacore balance
    tm = max(16, _round_up(pl.cdiv(m_al, steps), 16))
    return min(tm, m_al)


def gemm_bias_prelu(patches, w_t, bias, alpha, residual=None, res_sign=1.0,
                    out_dtype=jnp.bfloat16):
    """prelu(patches @ w_t + bias) [+ res_sign * residual].

    patches (M, K), w_t (K, Cout), bias (Cout,), alpha (1,), residual (M, Cout)
    added AFTER the PReLU.  Operands are bf16 on the MXU; accumulation and the
    epilogue are f32.  Cout is padded to a 128-lane multiple (unmasked stores),
    K to 128 when K >= 128, and M to the row tile; padding is sliced off.
    """
    M, K = patches.shape
    Cout = w_t.shape[1]
    Kpad = _round_up(K, 128) if K >= 128 else K
    Npad = _round_up(Cout, 128)
    out_bytes = jnp.dtype(out_dtype).itemsize
    tm = _choose_tm(M, Kpad, Npad, residual is not None, out_bytes)
    steps = pl.cdiv(M, tm)
    M_pad = steps * tm

    a = patches.astype(jnp.bfloat16)
    if M_pad != M or Kpad != K:
        a = jnp.pad(a, ((0, M_pad - M), (0, Kpad - K)))
    w = w_t.astype(jnp.bfloat16)
    if Kpad != K or Npad != Cout:
        w = jnp.pad(w, ((0, Kpad - K), (0, Npad - Cout)))
    b2 = bias.reshape(1, Cout).astype(jnp.float32)
    if Npad != Cout:
        b2 = jnp.pad(b2, ((0, 0), (0, Npad - Cout)))
    alpha1 = alpha.reshape(1).astype(jnp.float32)

    in_specs = [
        pl.BlockSpec((tm, Kpad), lambda i: (i, 0)),
        pl.BlockSpec((Kpad, Npad), lambda i: (0, 0)),
        pl.BlockSpec((1, Npad), lambda i: (0, 0)),
        pl.BlockSpec(memory_space=pltpu.MemorySpace.SMEM),   # PReLU slope
    ]
    args = [a, w, b2, alpha1]

    if residual is None:
        kernel = _gemm_bias_prelu_kernel
    else:
        r = residual.astype(jnp.bfloat16)
        if M_pad != M or Npad != Cout:
            r = jnp.pad(r, ((0, M_pad - M), (0, Npad - Cout)))
        in_specs.append(pl.BlockSpec((tm, Npad), lambda i: (i, 0)))
        args.append(r)
        kernel = functools.partial(_gemm_bias_prelu_res_kernel,
                                   res_sign=float(res_sign))

    out = pl.pallas_call(
        kernel,
        out_shape=jax.ShapeDtypeStruct((M_pad, Npad), out_dtype),
        grid=(steps,),
        in_specs=in_specs,
        out_specs=pl.BlockSpec((tm, Npad), lambda i: (i, 0)),
        compiler_params=pltpu.CompilerParams(
            dimension_semantics=("parallel",),
            vmem_limit_bytes=48 * 1024 * 1024),
    )(*args)
    if M_pad != M or Npad != Cout:
        out = out[:M, :Cout]
    return out


# ---------------------------------------------------------------------------
# Convolution wrappers (im2col glue in plain JAX, GEMM in Pallas), NHWC bf16.
# ---------------------------------------------------------------------------
def _im2col_nhwc(x, ksize, stride, pad):
    """NHWC im2col -> (N*Ho*Wo, k*k*C), columns ordered (kh, kw, c)."""
    n, h, w, c = x.shape
    xp = jnp.pad(x, ((0, 0), (pad, pad), (pad, pad), (0, 0))) if pad else x
    ho = (h + 2 * pad - ksize) // stride + 1
    wo = (w + 2 * pad - ksize) // stride + 1
    cols = []
    for kh in range(ksize):
        for kw in range(ksize):
            cols.append(xp[:, kh:kh + stride * (ho - 1) + 1:stride,
                           kw:kw + stride * (wo - 1) + 1:stride, :])
    pat = jnp.stack(cols, axis=3)                # (N, Ho, Wo, k*k, C)
    return pat.reshape(n * ho * wo, ksize * ksize * c), ho, wo


def conv2d_prelu(x, w, b, alpha, stride, pad, residual=None, res_sign=1.0,
                 out_dtype=jnp.bfloat16):
    """Conv2d (NHWC activations, OIHW weights) + bias + PReLU (+ residual)."""
    n = x.shape[0]
    cout, cin, kh, kw = w.shape
    if kh == 1 and kw == 1 and stride == 1 and pad == 0:
        patches = x.reshape(-1, cin)             # 1x1 conv needs no im2col
        ho, wo = x.shape[1], x.shape[2]
    else:
        patches, ho, wo = _im2col_nhwc(x, kh, stride, pad)
    w_t = w.transpose(2, 3, 1, 0).reshape(kh * kw * cin, cout)
    out = gemm_bias_prelu(patches, w_t, b, alpha, residual, res_sign, out_dtype)
    return out.reshape(n, ho, wo, cout)


def conv_transpose2d_prelu_phase(x, w_t, b, alpha, stride, pad):
    """prelu(ConvTranspose2d(x) + bias) returned in *phase layout*.

    PyTorch ConvTranspose2d (weight (Cin, Cout, k, k), k % stride == 0) is
    rewritten sub-pixel style: one stride-1 conv over a (q+1)x(q+1) window
    producing Cout*stride^2 channels.  The result is returned as
    (n, h, w, s, s, Cout) with phase[n, yl, xl, ry, rx, co] equal to the
    hi-res output pixel (yl*s+ry, xl*s+rx).  No pixel shuffle is performed.
    """
    n, h, w, _ = x.shape
    cin, cout, k, k2 = w_t.shape
    s = stride
    assert k % s == 0 and k2 == k
    q = k // s
    dmin = pad // s - (q - 1)
    dmax = (pad + s - 1) // s
    assert -dmin == dmax, "unsupported padding for sub-pixel decomposition"
    wn = dmax - dmin + 1                                  # = 3 for k=8, s=4

    patches, ho, wo = _im2col_nhwc(x, wn, 1, dmax)        # (n*h*w, wn*wn*cin)
    assert (ho, wo) == (h, w)

    # Equivalent dense weight: rows ordered (jy, jx, cin), cols (ry, rx, cout).
    zeros_blk = jnp.zeros((cin, cout), w_t.dtype)
    outer = []
    for jy in range(wn):
        for jx in range(wn):
            inner = []
            for ry in range(s):
                for rx in range(s):
                    my, mx = ry + pad, rx + pad
                    ty = my // s - (jy + dmin)
                    tx = mx // s - (jx + dmin)
                    if 0 <= ty < q and 0 <= tx < q:
                        inner.append(w_t[:, :, my % s + s * ty, mx % s + s * tx])
                    else:
                        inner.append(zeros_blk)
            outer.append(jnp.stack(inner, axis=0))        # (s*s, cin, cout)
    wc = jnp.stack(outer, axis=0)                         # (wn*wn, s*s, cin, cout)
    wc = wc.transpose(0, 2, 1, 3).reshape(wn * wn * cin, s * s * cout)
    bias = jnp.tile(b, s * s)                             # cols are (phase, cout)

    out = gemm_bias_prelu(patches, wc, bias, alpha, out_dtype=jnp.bfloat16)
    return out.reshape(n, h, w, s, s, cout)


def _im2col_diff_phase(h0_phase, x_hi, ksize, stride, pad):
    """im2col of (pixel_shuffle(h0_phase) - x_hi) without a hi-res tensor.

    h0_phase (n, h, w, s, s, c) bf16, x_hi (n, h*s, w*s, c) bf16.
    Returns (n*ho*wo, k*k*c) patches with columns ordered (kh, kw, c).
    The hi-res diff and both 6-D transposes of the old lowering are never
    materialized; XLA fuses the two gathers + subtract into one pass.
    """
    n, h, w, s, s2, c = h0_phase.shape
    assert s == s2 and stride == s
    H, W = h * s, w * s
    ho = (H + 2 * pad - ksize) // stride + 1
    wo = (W + 2 * pad - ksize) // stride + 1
    dy_min = (0 - pad) // s
    dy_max = (ksize - 1 - pad) // s
    lo = max(0, -dy_min)
    hi_y = max(0, ho - h + dy_max)
    hi_x = max(0, wo - w + dy_max)
    pp = jnp.pad(h0_phase,
                 ((0, 0), (lo, hi_y), (lo, hi_x), (0, 0), (0, 0), (0, 0)))
    xp = jnp.pad(x_hi, ((0, 0), (pad, pad), (pad, pad), (0, 0)))
    cols = []
    for kh in range(ksize):
        dy, ry = divmod(kh - pad, s)
        for kw in range(ksize):
            dx, rx = divmod(kw - pad, s)
            a = pp[:, lo + dy:lo + dy + ho, lo + dx:lo + dx + wo, ry, rx, :]
            bcol = xp[:, kh:kh + stride * (ho - 1) + 1:stride,
                      kw:kw + stride * (wo - 1) + 1:stride, :]
            cols.append(a - bcol)
    pat = jnp.stack(cols, axis=3)                # (n, ho, wo, k*k, c)
    return pat.reshape(n * ho * wo, ksize * ksize * c), ho, wo


# ---------------------------------------------------------------------------
# D_DownBlock: params + forward
# ---------------------------------------------------------------------------
def init_params(key, num_filter, kernel_size, num_stages):
    ks = jax.random.split(key, 8)
    c = num_filter

    def w_init(k, shape):
        fan_in = shape[1] * shape[2] * shape[3]
        return jax.random.normal(k, shape, jnp.float32) / jnp.sqrt(float(fan_in))

    return {
        "conv_w": w_init(ks[0], (c, c * num_stages, 1, 1)),
        "conv_b": jax.random.normal(ks[1], (c,), jnp.float32) * 0.01,
        "conv_a": jnp.array([0.25], jnp.float32),          # PReLU default slope
        "dc1_w": w_init(ks[2], (c, c, kernel_size, kernel_size)),
        "dc1_b": jax.random.normal(ks[3], (c,), jnp.float32) * 0.01,
        "dc1_a": jnp.array([0.25], jnp.float32),
        # ConvTranspose2d weight layout: (Cin, Cout, k, k)
        "dc2_w": w_init(ks[4], (c, c, kernel_size, kernel_size)),
        "dc2_b": jax.random.normal(ks[5], (c,), jnp.float32) * 0.01,
        "dc2_a": jnp.array([0.25], jnp.float32),
        "dc3_w": w_init(ks[6], (c, c, kernel_size, kernel_size)),
        "dc3_b": jax.random.normal(ks[7], (c,), jnp.float32) * 0.01,
        "dc3_a": jnp.array([0.25], jnp.float32),
    }


def d_down_block(params, x_nchw, kernel_size=8, stride=4):
    pad = (kernel_size - stride) // 2          # = 2, DBPN's (8, 4, 2) convention
    # NCHW -> NHWC once, bf16 end-to-end until the final output.
    x = jnp.transpose(x_nchw.astype(jnp.bfloat16), (0, 2, 3, 1))
    x = conv2d_prelu(x, params["conv_w"], params["conv_b"], params["conv_a"],
                     stride=1, pad=0)                         # (n, H, W, c) bf16
    l0 = conv2d_prelu(x, params["dc1_w"], params["dc1_b"], params["dc1_a"],
                      stride=stride, pad=pad)                 # (n, h, w, c) bf16
    n, h, w, c = l0.shape
    H = x.shape[1]
    assert (h - 1) * stride - 2 * pad + kernel_size == H, "shape mismatch (h0 - x)"

    # h0 = prelu(convT(l0) + b), kept in phase layout (no pixel shuffle).
    h0_phase = conv_transpose2d_prelu_phase(l0, params["dc2_w"], params["dc2_b"],
                                            params["dc2_a"], stride, pad)

    # down_conv3 patches gather (h0 - x) directly from the phase layout;
    # the "+ l0" residual is fused into the GEMM epilogue; output is f32.
    patches, ho, wo = _im2col_diff_phase(h0_phase, x, kernel_size, stride, pad)
    assert (ho, wo) == (h, w)
    w3 = params["dc3_w"].transpose(2, 3, 1, 0).reshape(
        kernel_size * kernel_size * c, c)
    out = gemm_bias_prelu(patches, w3, params["dc3_b"], params["dc3_a"],
                          residual=l0.reshape(n * h * w, c), res_sign=1.0,
                          out_dtype=jnp.float32)
    out = out.reshape(n, ho, wo, c)
    return jnp.transpose(out, (0, 3, 1, 2))    # back to NCHW, f32


# ---------------------------------------------------------------------------
# Pure-JAX f32 reference (for in-script correctness check)
# ---------------------------------------------------------------------------
def _prelu(y, a):
    return jnp.where(y >= 0, y, a.reshape(()) * y)


def _ref_conv(x, w, b, a, stride, pad):
    y = lax.conv_general_dilated(x, w, (stride, stride),
                                 [(pad, pad), (pad, pad)],
                                 dimension_numbers=("NCHW", "OIHW", "NCHW"))
    return _prelu(y + b.reshape(1, -1, 1, 1), a)


def _ref_convT(x, wt, b, a, stride, pad):
    k = wt.shape[2]
    w = jnp.flip(wt, axis=(2, 3)).transpose(1, 0, 2, 3)
    y = lax.conv_general_dilated(x, w, (1, 1),
                                 [(k - 1 - pad, k - 1 - pad)] * 2,
                                 lhs_dilation=(stride, stride),
                                 dimension_numbers=("NCHW", "OIHW", "NCHW"))
    return _prelu(y + b.reshape(1, -1, 1, 1), a)


def d_down_block_ref(params, x, kernel_size=8, stride=4):
    pad = (kernel_size - stride) // 2
    x = _ref_conv(x, params["conv_w"], params["conv_b"], params["conv_a"], 1, 0)
    l0 = _ref_conv(x, params["dc1_w"], params["dc1_b"], params["dc1_a"], stride, pad)
    h0 = _ref_convT(l0, params["dc2_w"], params["dc2_b"], params["dc2_a"], stride, pad)
    l1 = _ref_conv(h0 - x, params["dc3_w"], params["dc3_b"], params["dc3_a"], stride, pad)
    return l1 + l0


if __name__ == "__main__":
    num_filter, num_stages, ksize, stride = 4, 1, 8, 4
    key = jax.random.PRNGKey(0)
    kp, kx = jax.random.split(key)
    params = init_params(kp, num_filter, ksize, num_stages)
    x = jax.random.normal(kx, (2, num_filter * num_stages, 16, 16), jnp.float32)

    fwd = jax.jit(lambda p, xx: d_down_block(p, xx, ksize, stride))
    out = jax.block_until_ready(fwd(params, x))
    ref = jax.block_until_ready(d_down_block_ref(params, x, ksize, stride))

    assert out.shape == (2, num_filter, 4, 4), out.shape
    # bf16 activations / MXU operands with f32 accumulation vs an all-f32 ref.
    max_err = float(jnp.max(jnp.abs(out - ref)))
    assert jnp.allclose(out, ref, atol=1e-1, rtol=1e-1), f"max_err={max_err}"
    print("KERNEL_OK")
</pallas_src>

<mosaic_0001>
module attributes {stable_mosaic.version = 11 : i64} {
  func.func @_gemm_bias_prelu_kernel(%arg0: i32, %arg1: memref<256x4xbf16, #tpu.memory_space<vmem>>, %arg2: memref<4x128xbf16, #tpu.memory_space<vmem>>, %arg3: memref<1x128xf32, #tpu.memory_space<vmem>>, %arg4: memref<1xf32, #tpu.memory_space<smem>>, %arg5: memref<256x128xbf16, #tpu.memory_space<vmem>>) attributes {dimension_semantics = [#tpu.dimension_semantics<parallel>], iteration_bounds = array<i64: 2>, scalar_prefetch = 0 : i64, scratch_operands = 0 : i64, tpu.core_type = #tpu.core_type<tc>, window_params = [{transform_indices = @transform_0, window_bounds = array<i64: 256, 4>}, {pipeline_mode = #tpu.pipeline_mode<synchronous>, transform_indices = @transform_1, window_bounds = array<i64: 4, 128>}, {pipeline_mode = #tpu.pipeline_mode<synchronous>, transform_indices = @transform_2, window_bounds = array<i64: 1, 128>}, {transform_indices = @transform_3, window_bounds = array<i64: 1>}, {transform_indices = @transform_4, window_bounds = array<i64: 256, 128>}]} {
    %c0 = arith.constant 0 : index
    %c0_0 = arith.constant 0 : index
    %0 = vector.load %arg1[%c0, %c0_0] : memref<256x4xbf16, #tpu.memory_space<vmem>>, vector<256x4xbf16>
    %c0_1 = arith.constant 0 : index
    %c0_2 = arith.constant 0 : index
    %1 = vector.load %arg2[%c0_1, %c0_2] : memref<4x128xbf16, #tpu.memory_space<vmem>>, vector<4x128xbf16>
    %cst = arith.constant dense<0.000000e+00> : vector<256x128xf32>
    %2 = tpu.matmul %0, %1, %cst {dimension_numbers = #tpu.dot_dimension_numbers<[1], [0], [0], [1], [0, 0, 1, 1], [], []>} : vector<256x4xbf16>, vector<4x128xbf16>, vector<256x128xf32> -> vector<256x128xf32>
    %c0_3 = arith.constant 0 : index
    %c0_4 = arith.constant 0 : index
    %3 = vector.load %arg3[%c0_3, %c0_4] : memref<1x128xf32, #tpu.memory_space<vmem>>, vector<1x128xf32>
    %4 = vector.broadcast %3 : vector<1x128xf32> to vector<256x128xf32>
    %5 = arith.addf %2, %4 : vector<256x128xf32>
    %c0_5 = arith.constant 0 : index
    %6 = memref.load %arg4[%c0_5] : memref<1xf32, #tpu.memory_space<smem>>
    %cst_6 = arith.constant 0.000000e+00 : f32
    %7 = vector.broadcast %cst_6 : f32 to vector<256x128xf32>
    %8 = arith.cmpf oge, %5, %7 : vector<256x128xf32>
    %9 = vector.broadcast %6 : f32 to vector<256x128xf32>
    %10 = arith.mulf %9, %5 : vector<256x128xf32>
    %11 = arith.select %8, %5, %10 : vector<256x128xi1>, vector<256x128xf32>
    %12 = arith.truncf %11 : vector<256x128xf32> to vector<256x128xbf16>
    %c0_7 = arith.constant 0 : index
    %c0_8 = arith.constant 0 : index
    %13 = vector.load %arg5[%c0_7, %c0_8] : memref<256x128xbf16, #tpu.memory_space<vmem>>, vector<256x128xbf16>
    tpu.vector_store %arg5[%c0_7, %c0_8], %12 {strides = array<i32>} : memref<256x128xbf16, #tpu.memory_space<vmem>>, vector<256x128xbf16>,
    return
  }
  func.func @transform_0(%arg0: i32) -> (i32, i32) {
    %c0_i32 = arith.constant 0 : i32
    %c0_i32_0 = arith.constant 0 : i32
    return %arg0, %c0_i32 : i32, i32
  }
  func.func @transform_1(%arg0: i32) -> (i32, i32) {
    %c0_i32 = arith.constant 0 : i32
    %c0_i32_0 = arith.constant 0 : i32
    %c0_i32_1 = arith.constant 0 : i32
    return %c0_i32, %c0_i32_0 : i32, i32
  }
  func.func @transform_2(%arg0: i32) -> (i32, i32) {
    %c0_i32 = arith.constant 0 : i32
    %c0_i32_0 = arith.constant 0 : i32
    %c0_i32_1 = arith.constant 0 : i32
    return %c0_i32, %c0_i32_0 : i32, i32
  }
  func.func @transform_3(%arg0: i32) -> i32 {
    %c0_i32 = arith.constant 0 : i32
    %c0_i32_0 = arith.constant 0 : i32
    return %c0_i32 : i32
  }
  func.func @transform_4(%arg0: i32) -> (i32, i32) {
    %c0_i32 = arith.constant 0 : i32
    %c0_i32_0 = arith.constant 0 : i32
    return %arg0, %c0_i32 : i32, i32
  }
}

module attributes {stable_mosaic.version = 11 : i64} {
  func.func @_gemm_bias_prelu_kernel(%arg0: i32, %arg1: memref<16x256xbf16, #tpu.memory_space<vmem>>, %arg2: memref<256x128xbf16, #tpu.memory_space<vmem>>, %arg3: memref<1x128xf32, #tpu.memory_space<vmem>>, %arg4: memref<1xf32, #tpu.memory_space<smem>>, %arg5: memref<16x128xbf16, #tpu.memory_space<vmem>>) attributes {dimension_semantics = [#tpu.dimension_semantics<parallel>], iteration_bounds = array<i64: 2>, scalar_prefetch = 0 : i64, scratch_operands = 0 : i64, tpu.core_type = #tpu.core_type<tc>, window_params = [{transform_indices = @transform_0, window_bounds = array<i64: 16, 256>}, {pipeline_mode = #tpu.pipeline_mode<synchronous>, transform_indices = @transform_1, window_bounds = array<i64: 256, 128>}, {pipeline_mode = #tpu.pipeline_mode<synchronous>, transform_indices = @transform_2, window_bounds = array<i64: 1, 128>}, {transform_indices = @transform_3, window_bounds = array<i64: 1>}, {transform_indices = @transform_4, window_bounds = array<i64: 16, 128>}]} {
    %c0 = arith.constant 0 : index
    %c0_0 = arith.constant 0 : index
    %0 = vector.load %arg1[%c0, %c0_0] : memref<16x256xbf16, #tpu.memory_space<vmem>>, vector<16x256xbf16>
    %c0_1 = arith.constant 0 : index
    %c0_2 = arith.constant 0 : index
    %1 = vector.load %arg2[%c0_1, %c0_2] : memref<256x128xbf16, #tpu.memory_space<vmem>>, vector<256x128xbf16>
    %cst = arith.constant dense<0.000000e+00> : vector<16x128xf32>
    %2 = tpu.matmul %0, %1, %cst {dimension_numbers = #tpu.dot_dimension_numbers<[1], [0], [0], [1], [0, 0, 1, 1], [], []>} : vector<16x256xbf16>, vector<256x128xbf16>, vector<16x128xf32> -> vector<16x128xf32>
    %c0_3 = arith.constant 0 : index
    %c0_4 = arith.constant 0 : index
    %3 = vector.load %arg3[%c0_3, %c0_4] : memref<1x128xf32, #tpu.memory_space<vmem>>, vector<1x128xf32>
    %4 = vector.broadcast %3 : vector<1x128xf32> to vector<16x128xf32>
    %5 = arith.addf %2, %4 : vector<16x128xf32>
    %c0_5 = arith.constant 0 : index
    %6 = memref.load %arg4[%c0_5] : memref<1xf32, #tpu.memory_space<smem>>
    %cst_6 = arith.constant 0.000000e+00 : f32
    %7 = vector.broadcast %cst_6 : f32 to vector<16x128xf32>
    %8 = arith.cmpf oge, %5, %7 : vector<16x128xf32>
    %9 = vector.broadcast %6 : f32 to vector<16x128xf32>
    %10 = arith.mulf %9, %5 : vector<16x128xf32>
    %11 = arith.select %8, %5, %10 : vector<16x128xi1>, vector<16x128xf32>
    %12 = arith.truncf %11 : vector<16x128xf32> to vector<16x128xbf16>
    %c0_7 = arith.constant 0 : index
    %c0_8 = arith.constant 0 : index
    %13 = vector.load %arg5[%c0_7, %c0_8] : memref<16x128xbf16, #tpu.memory_space<vmem>>, vector<16x128xbf16>
    tpu.vector_store %arg5[%c0_7, %c0_8], %12 {strides = array<i32>} : memref<16x128xbf16, #tpu.memory_space<vmem>>, vector<16x128xbf16>,
    return
  }
  func.func @transform_0(%arg0: i32) -> (i32, i32) {
    %c0_i32 = arith.constant 0 : i32
    %c0_i32_0 = arith.constant 0 : i32
    return %arg0, %c0_i32 : i32, i32
  }
  func.func @transform_1(%arg0: i32) -> (i32, i32) {
    %c0_i32 = arith.constant 0 : i32
    %c0_i32_0 = arith.constant 0 : i32
    %c0_i32_1 = arith.constant 0 : i32
    return %c0_i32, %c0_i32_0 : i32, i32
  }
  func.func @transform_2(%arg0: i32) -> (i32, i32) {
    %c0_i32 = arith.constant 0 : i32
    %c0_i32_0 = arith.constant 0 : i32
    %c0_i32_1 = arith.constant 0 : i32
    return %c0_i32, %c0_i32_0 : i32, i32
  }
  func.func @transform_3(%arg0: i32) -> i32 {
    %c0_i32 = arith.constant 0 : i32
    %c0_i32_0 = arith.constant 0 : i32
    return %c0_i32 : i32
  }
  func.func @transform_4(%arg0: i32) -> (i32, i32) {
    %c0_i32 = arith.constant 0 : i32
    %c0_i32_0 = arith.constant 0 : i32
    return %arg0, %c0_i32 : i32, i32
  }
}

module attributes {stable_mosaic.version = 11 : i64} {
  func.func @_gemm_bias_prelu_kernel(%arg0: i32, %arg1: memref<16x36xbf16, #tpu.memory_space<vmem>>, %arg2: memref<36x128xbf16, #tpu.memory_space<vmem>>, %arg3: memref<1x128xf32, #tpu.memory_space<vmem>>, %arg4: memref<1xf32, #tpu.memory_space<smem>>, %arg5: memref<16x128xbf16, #tpu.memory_space<vmem>>) attributes {dimension_semantics = [#tpu.dimension_semantics<parallel>], iteration_bounds = array<i64: 2>, scalar_prefetch = 0 : i64, scratch_operands = 0 : i64, tpu.core_type = #tpu.core_type<tc>, window_params = [{transform_indices = @transform_0, window_bounds = array<i64: 16, 36>}, {pipeline_mode = #tpu.pipeline_mode<synchronous>, transform_indices = @transform_1, window_bounds = array<i64: 36, 128>}, {pipeline_mode = #tpu.pipeline_mode<synchronous>, transform_indices = @transform_2, window_bounds = array<i64: 1, 128>}, {transform_indices = @transform_3, window_bounds = array<i64: 1>}, {transform_indices = @transform_4, window_bounds = array<i64: 16, 128>}]} {
    %c0 = arith.constant 0 : index
    %c0_0 = arith.constant 0 : index
    %0 = vector.load %arg1[%c0, %c0_0] : memref<16x36xbf16, #tpu.memory_space<vmem>>, vector<16x36xbf16>
    %c0_1 = arith.constant 0 : index
    %c0_2 = arith.constant 0 : index
    %1 = vector.load %arg2[%c0_1, %c0_2] : memref<36x128xbf16, #tpu.memory_space<vmem>>, vector<36x128xbf16>
    %cst = arith.constant dense<0.000000e+00> : vector<16x128xf32>
    %2 = tpu.matmul %0, %1, %cst {dimension_numbers = #tpu.dot_dimension_numbers<[1], [0], [0], [1], [0, 0, 1, 1], [], []>} : vector<16x36xbf16>, vector<36x128xbf16>, vector<16x128xf32> -> vector<16x128xf32>
    %c0_3 = arith.constant 0 : index
    %c0_4 = arith.constant 0 : index
    %3 = vector.load %arg3[%c0_3, %c0_4] : memref<1x128xf32, #tpu.memory_space<vmem>>, vector<1x128xf32>
    %4 = vector.broadcast %3 : vector<1x128xf32> to vector<16x128xf32>
    %5 = arith.addf %2, %4 : vector<16x128xf32>
    %c0_5 = arith.constant 0 : index
    %6 = memref.load %arg4[%c0_5] : memref<1xf32, #tpu.memory_space<smem>>
    %cst_6 = arith.constant 0.000000e+00 : f32
    %7 = vector.broadcast %cst_6 : f32 to vector<16x128xf32>
    %8 = arith.cmpf oge, %5, %7 : vector<16x128xf32>
    %9 = vector.broadcast %6 : f32 to vector<16x128xf32>
    %10 = arith.mulf %9, %5 : vector<16x128xf32>
    %11 = arith.select %8, %5, %10 : vector<16x128xi1>, vector<16x128xf32>
    %12 = arith.truncf %11 : vector<16x128xf32> to vector<16x128xbf16>
    %c0_7 = arith.constant 0 : index
    %c0_8 = arith.constant 0 : index
    %13 = vector.load %arg5[%c0_7, %c0_8] : memref<16x128xbf16, #tpu.memory_space<vmem>>, vector<16x128xbf16>
    tpu.vector_store %arg5[%c0_7, %c0_8], %12 {strides = array<i32>} : memref<16x128xbf16, #tpu.memory_space<vmem>>, vector<16x128xbf16>,
    return
  }
  func.func @transform_0(%arg0: i32) -> (i32, i32) {
    %c0_i32 = arith.constant 0 : i32
    %c0_i32_0 = arith.constant 0 : i32
    return %arg0, %c0_i32 : i32, i32
  }
  func.func @transform_1(%arg0: i32) -> (i32, i32) {
    %c0_i32 = arith.constant 0 : i32
    %c0_i32_0 = arith.constant 0 : i32
    %c0_i32_1 = arith.constant 0 : i32
    return %c0_i32, %c0_i32_0 : i32, i32
  }
  func.func @transform_2(%arg0: i32) -> (i32, i32) {
    %c0_i32 = arith.constant 0 : i32
    %c0_i32_0 = arith.constant 0 : i32
    %c0_i32_1 = arith.constant 0 : i32
    return %c0_i32, %c0_i32_0 : i32, i32
  }
  func.func @transform_3(%arg0: i32) -> i32 {
    %c0_i32 = arith.constant 0 : i32
    %c0_i32_0 = arith.constant 0 : i32
    return %c0_i32 : i32
  }
  func.func @transform_4(%arg0: i32) -> (i32, i32) {
    %c0_i32 = arith.constant 0 : i32
    %c0_i32_0 = arith.constant 0 : i32
    return %arg0, %c0_i32 : i32, i32
  }
}

module attributes {stable_mosaic.version = 11 : i64} {
  func.func @_gemm_bias_prelu_res_kernel(%arg0: i32, %arg1: memref<16x256xbf16, #tpu.memory_space<vmem>>, %arg2: memref<256x128xbf16, #tpu.memory_space<vmem>>, %arg3: memref<1x128xf32, #tpu.memory_space<vmem>>, %arg4: memref<1xf32, #tpu.memory_space<smem>>, %arg5: memref<16x128xbf16, #tpu.memory_space<vmem>>, %arg6: memref<16x128xf32, #tpu.memory_space<vmem>>) attributes {dimension_semantics = [#tpu.dimension_semantics<parallel>], iteration_bounds = array<i64: 2>, scalar_prefetch = 0 : i64, scratch_operands = 0 : i64, tpu.core_type = #tpu.core_type<tc>, window_params = [{transform_indices = @transform_0, window_bounds = array<i64: 16, 256>}, {pipeline_mode = #tpu.pipeline_mode<synchronous>, transform_indices = @transform_1, window_bounds = array<i64: 256, 128>}, {pipeline_mode = #tpu.pipeline_mode<synchronous>, transform_indices = @transform_2, window_bounds = array<i64: 1, 128>}, {transform_indices = @transform_3, window_bounds = array<i64: 1>}, {transform_indices = @transform_4, window_bounds = array<i64: 16, 128>}, {transform_indices = @transform_5, window_bounds = array<i64: 16, 128>}]} {
    %c0 = arith.constant 0 : index
    %c0_0 = arith.constant 0 : index
    %0 = vector.load %arg1[%c0, %c0_0] : memref<16x256xbf16, #tpu.memory_space<vmem>>, vector<16x256xbf16>
    %c0_1 = arith.constant 0 : index
    %c0_2 = arith.constant 0 : index
    %1 = vector.load %arg2[%c0_1, %c0_2] : memref<256x128xbf16, #tpu.memory_space<vmem>>, vector<256x128xbf16>
    %cst = arith.constant dense<0.000000e+00> : vector<16x128xf32>
    %2 = tpu.matmul %0, %1, %cst {dimension_numbers = #tpu.dot_dimension_numbers<[1], [0], [0], [1], [0, 0, 1, 1], [], []>} : vector<16x256xbf16>, vector<256x128xbf16>, vector<16x128xf32> -> vector<16x128xf32>
    %c0_3 = arith.constant 0 : index
    %c0_4 = arith.constant 0 : index
    %3 = vector.load %arg3[%c0_3, %c0_4] : memref<1x128xf32, #tpu.memory_space<vmem>>, vector<1x128xf32>
    %4 = vector.broadcast %3 : vector<1x128xf32> to vector<16x128xf32>
    %5 = arith.addf %2, %4 : vector<16x128xf32>
    %c0_5 = arith.constant 0 : index
    %6 = memref.load %arg4[%c0_5] : memref<1xf32, #tpu.memory_space<smem>>
    %cst_6 = arith.constant 0.000000e+00 : f32
    %7 = vector.broadcast %cst_6 : f32 to vector<16x128xf32>
    %8 = arith.cmpf oge, %5, %7 : vector<16x128xf32>
    %9 = vector.broadcast %6 : f32 to vector<16x128xf32>
    %10 = arith.mulf %9, %5 : vector<16x128xf32>
    %11 = arith.select %8, %5, %10 : vector<16x128xi1>, vector<16x128xf32>
    %c0_7 = arith.constant 0 : index
    %c0_8 = arith.constant 0 : index
    %12 = vector.load %arg5[%c0_7, %c0_8] : memref<16x128xbf16, #tpu.memory_space<vmem>>, vector<16x128xbf16>
    %13 = arith.extf %12 : vector<16x128xbf16> to vector<16x128xf32>
    %cst_9 = arith.constant 1.000000e+00 : f32
    %14 = vector.broadcast %cst_9 : f32 to vector<16x128xf32>
    %15 = arith.mulf %14, %13 : vector<16x128xf32>
    %16 = arith.addf %11, %15 : vector<16x128xf32>
    %c0_10 = arith.constant 0 : index
    %c0_11 = arith.constant 0 : index
    %17 = vector.load %arg6[%c0_10, %c0_11] : memref<16x128xf32, #tpu.memory_space<vmem>>, vector<16x128xf32>
    tpu.vector_store %arg6[%c0_10, %c0_11], %16 {strides = array<i32>} : memref<16x128xf32, #tpu.memory_space<vmem>>, vector<16x128xf32>,
    return
  }
  func.func @transform_0(%arg0: i32) -> (i32, i32) {
    %c0_i32 = arith.constant 0 : i32
    %c0_i32_0 = arith.constant 0 : i32
    return %arg0, %c0_i32 : i32, i32
  }
  func.func @transform_1(%arg0: i32) -> (i32, i32) {
    %c0_i32 = arith.constant 0 : i32
    %c0_i32_0 = arith.constant 0 : i32
    %c0_i32_1 = arith.constant 0 : i32
    return %c0_i32, %c0_i32_0 : i32, i32
  }
  func.func @transform_2(%arg0: i32) -> (i32, i32) {
    %c0_i32 = arith.constant 0 : i32
    %c0_i32_0 = arith.constant 0 : i32
    %c0_i32_1 = arith.constant 0 : i32
    return %c0_i32, %c0_i32_0 : i32, i32
  }
  func.func @transform_3(%arg0: i32) -> i32 {
    %c0_i32 = arith.constant 0 : i32
    %c0_i32_0 = arith.constant 0 : i32
    return %c0_i32 : i32
  }
  func.func @transform_4(%arg0: i32) -> (i32, i32) {
    %c0_i32 = arith.constant 0 : i32
    %c0_i32_0 = arith.constant 0 : i32
    return %arg0, %c0_i32 : i32, i32
  }
  func.func @transform_5(%arg0: i32) -> (i32, i32) {
    %c0_i32 = arith.constant 0 : i32
    %c0_i32_0 = arith.constant 0 : i32
    return %arg0, %c0_i32 : i32, i32
  }
}

</mosaic_0001>

<llo_original>
// kernel: tile.8
$region0: #{tile.8}
  #allocation0 [shape = 's32[1]{0}', space=sflag, size = 0x4, scoped, tag = 'scoped memory for tile.8']
  %s0 = inlined_call_operand.vmem [shape: f32[4], index: 0, kind: input, shape index: {}]
  %s1 = inlined_call_operand.vmem [shape: f32[16,4], index: 1, kind: output, shape index: {}]
  // Predicated region
  $region2: #{tile.8} parent=0 // pred_check
    _
  $region3: #{tile.8} parent=0 // pred_check_branch
    %3 = sbr.rel (0) target = $region5
  $region4: #{tile.8} parent=0 // pred_region
    _
  $region5: #{tile.8} parent=0 // pred_fallthru
    _
  %v4 = vld [vmem:[%s0] ss:$0 sm:$0xff]
  %5 = vst [vmem:[%s1] sm:$0xff] %v4
  %s6 = scalar_lea.vmem %s1, 8
  %7 = vst [vmem:[%s6] sm:$0xff] %v4

// kernel: tile.9
$region0: #{tile.9}
  %s0 = inlined_call_operand.vmem [shape: f32[16,4], index: 0, kind: input, shape index: {}]
  %s1 = inlined_call_operand.vmem [shape: f32[1,64], index: 1, kind: output, shape index: {}]
  $region1: #{tile.9} parent=0
    #allocation0 [shape = 'u8[4096]{0}', space=vmem, size = 0x1000, scoped, tag = 'scoped mem for output reshape']
    %v2 = vld [vmem:[%s0] sm:$0x1]
    %vm3 = vcmask 31744
    %4 = vst.msk [vmem:[#allocation0] sm:$0x1] %vm3, %v2
    %s5 = scalar_lea.vmem %s0, 15
    %v6 = vld [vmem:[%s5] sm:$0x1]
    %7 = vrot.lane.b32.xlu0 %v6, 60
    %v8 = vpop.permute.xlu0 %7
    %vm9 = vcmask 523744
    %10 = vst.msk [vmem:[#allocation0] sm:$0x1] %vm9, %v8
    %s11 = scalar_lea.vmem %s0, 14
    %v12 = vld [vmem:[%s11] sm:$0x1]
    %13 = vrot.lane.b32.xlu0 %v12, 56
    %v14 = vpop.permute.xlu0 %13
    %vm15 = vcmask 490944
    %16 = vst.msk [vmem:[#allocation0] sm:$0x1] %vm15, %v14
    %s17 = scalar_lea.vmem %s0, 13
    %v18 = vld [vmem:[%s17] sm:$0x1]
    %19 = vrot.lane.b32.xlu0 %v18, 52
    %v20 = vpop.permute.xlu0 %19
    %vm21 = vcmask 458144
    %22 = vst.msk [vmem:[#allocation0] sm:$0x1] %vm21, %v20
    %s23 = scalar_lea.vmem %s0, 12
    %v24 = vld [vmem:[%s23] sm:$0x1]
    %25 = vrot.lane.b32.xlu0 %v24, 48
    %v26 = vpop.permute.xlu0 %25
    %vm27 = vcmask 425344
    %28 = vst.msk [vmem:[#allocation0] sm:$0x1] %vm27, %v26
    %s29 = scalar_lea.vmem %s0, 11
    %v30 = vld [vmem:[%s29] sm:$0x1]
    %31 = vrot.lane.b32.xlu0 %v30, 44
    %v32 = vpop.permute.xlu0 %31
    %vm33 = vcmask 392544
    %34 = vst.msk [vmem:[#allocation0] sm:$0x1] %vm33, %v32
    %s35 = scalar_lea.vmem %s0, 10
    %v36 = vld [vmem:[%s35] sm:$0x1]
    %37 = vrot.lane.b32.xlu0 %v36, 40
    %v38 = vpop.permute.xlu0 %37
    %vm39 = vcmask 359744
    %40 = vst.msk [vmem:[#allocation0] sm:$0x1] %vm39, %v38
    %s41 = scalar_lea.vmem %s0, 9
    %v42 = vld [vmem:[%s41] sm:$0x1]
    %43 = vrot.lane.b32.xlu0 %v42, 36
    %v44 = vpop.permute.xlu0 %43
    %vm45 = vcmask 326944
    %46 = vst.msk [vmem:[#allocation0] sm:$0x1] %vm45, %v44
    %s47 = scalar_lea.vmem %s0, 8
    %v48 = vld [vmem:[%s47] sm:$0x1]
    %49 = vrot.lane.b32.xlu0 %v48, 32
    %v50 = vpop.permute.xlu0 %49
    %vm51 = vcmask 294144
    %52 = vst.msk [vmem:[#allocation0] sm:$0x1] %vm51, %v50
    %s53 = scalar_lea.vmem %s0, 7
    %v54 = vld [vmem:[%s53] sm:$0x1]
    %55 = vrot.lane.b32.xlu0 %v54, 28
    %v56 = vpop.permute.xlu0 %55
    %vm57 = vcmask 261344
    %58 = vst.msk [vmem:[#allocation0] sm:$0x1] %vm57, %v56
    %s59 = scalar_lea.vmem %s0, 6
    %v60 = vld [vmem:[%s59] sm:$0x1]
    %61 = vrot.lane.b32.xlu0 %v60, 24
    %v62 = vpop.permute.xlu0 %61
    %vm63 = vcmask 228544
    %64 = vst.msk [vmem:[#allocation0] sm:$0x1] %vm63, %v62
    %s65 = scalar_lea.vmem %s0, 5
    %v66 = vld [vmem:[%s65] sm:$0x1]
    %67 = vrot.lane.b32.xlu0 %v66, 20
    %v68 = vpop.permute.xlu0 %67
    %vm69 = vcmask 195744
    %70 = vst.msk [vmem:[#allocation0] sm:$0x1] %vm69, %v68
    %s71 = scalar_lea.vmem %s0, 4
    %v72 = vld [vmem:[%s71] sm:$0x1]
    %73 = vrot.lane.b32.xlu0 %v72, 16
    %v74 = vpop.permute.xlu0 %73
    %vm75 = vcmask 162944
    %76 = vst.msk [vmem:[#allocation0] sm:$0x1] %vm75, %v74
    %s77 = scalar_lea.vmem %s0, 3
    %v78 = vld [vmem:[%s77] sm:$0x1]
    %79 = vrot.lane.b32.xlu0 %v78, 12
    %v80 = vpop.permute.xlu0 %79
    %vm81 = vcmask 130144
    %82 = vst.msk [vmem:[#allocation0] sm:$0x1] %vm81, %v80
    %s83 = scalar_lea.vmem %s0, 2
    %v84 = vld [vmem:[%s83] sm:$0x1]
    %85 = vrot.lane.b32.xlu0 %v84, 8
    %v86 = vpop.permute.xlu0 %85
    %vm87 = vcmask 97344
    %88 = vst.msk [vmem:[#allocation0] sm:$0x1] %vm87, %v86
    %s89 = scalar_lea.vmem %s0, 1
    %v90 = vld [vmem:[%s89] sm:$0x1]
    %91 = vrot.lane.b32.xlu0 %v90, 4
    %v92 = vpop.permute.xlu0 %91
    %vm93 = vcmask 64544
    %94 = vst.msk [vmem:[#allocation0] sm:$0x1] %vm93, %v92
    %s96 = sshll.u32 1, 1
    %s97 = ssub.s32 %s96, 1
    %v99 = vld [vmem:[#allocation0] sm:%s97]
    %s100 = sshll.u32 1, 1
    %s101 = ssub.s32 %s100, 1
    %102 = vst [vmem:[%s1] sm:%s101] %v99

// kernel: _lambda_.4
$region0: #{_lambda_.4}
  #allocation0 [shape = 'u32[]', space=smem, size = 0x4, offset = 0x4, fixed_abs, tag = 'smem constant byte address 0x4 - core index']
  #allocation1 [shape = 'u32[144,128]{1,0:T(1,128)}', space=vmem, size = 0x12000, scoped, tag = 'internal scratch']
  #allocation2 [shape = 'f32[1]{0:T(128)S(6)}', space=smem, size = 0x200, scoped, tag = 'scoped memory for _lambda_.4']
  %s0 = inlined_call_operand.vmem [shape: bf16[512,4], index: 0, kind: input, shape index: {}]
  %s1 = inlined_call_operand.vmem [shape: bf16[4,128], index: 1, kind: input, shape index: {}]
  %s2 = inlined_call_operand.vmem [shape: f32[1,128], index: 2, kind: input, shape index: {}]
  %s3 = inlined_call_operand.<no memory space> [shape: f32[1], index: 3, kind: input, shape index: {}]
  %s4 = inlined_call_operand.vmem [shape: bf16[512,128], index: 4, kind: output, shape index: {}]
  %s5 = sld [smem:[#allocation0]]
  $region49: #{_lambda_.4} parent=0
    _
  %s7 = ssub.s32 1, %s5
  %s8 = scalar_select 0, %s7, %s5
  %9 = sst [smem:[#allocation2]] %s3
  loop: start=0, step=1, limit=4
  $region2: #{_lambda_.4} parent=0 // loop_pre_header
    _
  $region3: #{_lambda_.4} parent=0 // loop_header
    %s11 = sphi 0, %s15
    %p12 = scmp.ge.s32.totalorder %s11, 4
    %s21 = sphi 0, %s23
    %s24 = sphi 0, %s21
    %s25 = sphi 0, %s24
    %s41 = sphi 0, %s25
    %s45 = sphi 0, %s45
    %s47 = sphi 0, %s45
    %s48 = sphi 0, %s47
    %s62 = sphi 0, %s48
    %s66 = sphi 0, %s66
    %s68 = sphi 0, %s66
    %s69 = sphi 0, %s68
    %s83 = sphi 0, %s69
    %s87 = sphi 0, %s87
    %s89 = sphi 0, %s87
    %s90 = sphi 0, %s89
    %s104 = sphi 0, %s90
    %s110 = sphi 0, %s112
    %s113 = sphi 0, %s110
    %s114 = sphi 0, %s113
    %s130 = sphi 0, %s114
  $region4: #{_lambda_.4} parent=0 // loop_header_branch
    %14 = sbr.rel (%p12) target = $region8
  $region5: #{_lambda_.4} parent=0 // loop_body
    %s16 = ssub.s32 %s11, 1
    %s17 = ssub.s32 %s11, 2
    %s18 = sadd.s32 %s11, 1
    %s19 = ssub.s32 %s11, %s18
    %p20 = scmp.eq.s32.totalorder %s19, 0
    %s22 = sadd.s32 %s21, 1
    %s23 = scalar_select %p20, %s21, %s22
    %p26 = pneg %p20
    %p27 = scmp.eq.s32.totalorder %s11, 1
    %p28 = por %p26, %p27
    %p29 = scmp.ne.s32.totalorder %s21, %s24
    %p30 = scmp.eq.s32.totalorder %s11, 0
    %p31 = por %p29, %p30
    %p32 = scmp.ne.s32.totalorder %s21, %s24
    %p33 = scmp.eq.s32.totalorder %s16, 1
    %p34 = por %p32, %p33
    %p35 = scmp.ne.s32.totalorder %s24, %s25
    %p36 = scmp.eq.s32.totalorder %s16, 0
    %p37 = por %p35, %p36
    %p38 = scmp.ne.s32.totalorder %s24, %s25
    %p39 = scmp.eq.s32.totalorder %s17, 1
    %p40 = por %p38, %p39
    %p42 = scmp.ne.s32.totalorder %s25, %s41
    %p43 = scmp.eq.s32.totalorder %s17, 0
    %p44 = por %p42, %p43
    %s46 = sadd.s32 %s45, 1
    %p49 = scmp.eq.s32.totalorder %s11, 1
    %p50 = scmp.ne.s32.totalorder %s45, %s47
    %p51 = scmp.eq.s32.totalorder %s11, 0
    %p52 = por %p50, %p51
    %p53 = scmp.ne.s32.totalorder %s45, %s47
    %p54 = scmp.eq.s32.totalorder %s16, 1
    %p55 = por %p53, %p54
    %p56 = scmp.ne.s32.totalorder %s47, %s48
    %p57 = scmp.eq.s32.totalorder %s16, 0
    %p58 = por %p56, %p57
    %p59 = scmp.ne.s32.totalorder %s47, %s48
    %p60 = scmp.eq.s32.totalorder %s17, 1
    %p61 = por %p59, %p60
    %p63 = scmp.ne.s32.totalorder %s48, %s62
    %p64 = scmp.eq.s32.totalorder %s17, 0
    %p65 = por %p63, %p64
    %s67 = sadd.s32 %s66, 1
    %p70 = scmp.eq.s32.totalorder %s11, 1
    %p71 = scmp.ne.s32.totalorder %s66, %s68
    %p72 = scmp.eq.s32.totalorder %s11, 0
    %p73 = por %p71, %p72
    %p74 = scmp.ne.s32.totalorder %s66, %s68
    %p75 = scmp.eq.s32.totalorder %s16, 1
    %p76 = por %p74, %p75
    %p77 = scmp.ne.s32.totalorder %s68, %s69
    %p78 = scmp.eq.s32.totalorder %s16, 0
    %p79 = por %p77, %p78
    %p80 = scmp.ne.s32.totalorder %s68, %s69
    %p81 = scmp.eq.s32.totalorder %s17, 1
    %p82 = por %p80, %p81
    %p84 = scmp.ne.s32.totalorder %s69, %s83
    %p85 = scmp.eq.s32.totalorder %s17, 0
    %p86 = por %p84, %p85
    %s88 = sadd.s32 %s87, 1
    %p91 = scmp.eq.s32.totalorder %s11, 1
    %p92 = scmp.ne.s32.totalorder %s87, %s89
    %p93 = scmp.eq.s32.totalorder %s11, 0
    %p94 = por %p92, %p93
    %p95 = scmp.ne.s32.totalorder %s87, %s89
    %p96 = scmp.eq.s32.totalorder %s16, 1
    %p97 = por %p95, %p96
    %p98 = scmp.ne.s32.totalorder %s89, %s90
    %p99 = scmp.eq.s32.totalorder %s16, 0
    %p100 = por %p98, %p99
    %p101 = scmp.ne.s32.totalorder %s89, %s90
    %p102 = scmp.eq.s32.totalorder %s17, 1
    %p103 = por %p101, %p102
    %p105 = scmp.ne.s32.totalorder %s90, %s104
    %p106 = scmp.eq.s32.totalorder %s17, 0
    %p107 = por %p105, %p106
    %s108 = ssub.s32 %s11, %s18
    %p109 = scmp.eq.s32.totalorder %s108, 0
    %s111 = sadd.s32 %s110, 1
    %s112 = scalar_select %p109, %s110, %s111
    %p115 = pneg %p109
    %p116 = scmp.eq.s32.totalorder %s11, 1
    %p117 = por %p115, %p116
    %p118 = scmp.ne.s32.totalorder %s110, %s113
    %p119 = scmp.eq.s32.totalorder %s11, 0
    %p120 = por %p118, %p119
    %p121 = scmp.ne.s32.totalorder %s110, %s113
    %p122 = scmp.eq.s32.totalorder %s16, 1
    %p123 = por %p121, %p122
    %p124 = scmp.ne.s32.totalorder %s113, %s114
    %p125 = scmp.eq.s32.totalorder %s16, 0
    %p126 = por %p124, %p125
    %p127 = scmp.ne.s32.totalorder %s113, %s114
    %p128 = scmp.eq.s32.totalorder %s17, 1
    %p129 = por %p127, %p128
    %p131 = scmp.ne.s32.totalorder %s114, %s130
    %p132 = scmp.eq.s32.totalorder %s17, 0
    %p133 = por %p131, %p132
    %p134 = scmp.le.s32.totalorder 1, %s11
    %p135 = scmp.lt.s32.totalorder %s11, 3
    %p136 = pnand %p134, %p135
    %p137 = pneg %p136
    // Predicated region
    $region9: #{_lambda_.4} parent=5 // pred_check
      _
    $region10: #{_lambda_.4} parent=5 // pred_check_branch
      %139 = sbr.rel (%p136) target = $region12
    $region11: #{_lambda_.4} parent=5 // pred_region
      %s140 = ssub.s32 %s11, 1
      // Predicated region
      $region13: #{_lambda_.4} parent=11 // pred_check
        %p141 = pneg %p58
      $region14: #{_lambda_.4} parent=11 // pred_check_branch
        %143 = sbr.rel (%p141) target = $region16
      $region15: #{_lambda_.4} parent=11 // pred_region
        _
      $region16: #{_lambda_.4} parent=11 // pred_fallthru
        _
      // Predicated region
      $region17: #{_lambda_.4} parent=11 // pred_check
        %p144 = pneg %p79
      $region18: #{_lambda_.4} parent=11 // pred_check_branch
        %146 = sbr.rel (%p144) target = $region20
      $region19: #{_lambda_.4} parent=11 // pred_region
        _
      $region20: #{_lambda_.4} parent=11 // pred_fallthru
        _
      // Predicated region
      $region21: #{_lambda_.4} parent=11 // pred_check
        %p147 = pneg %p100
      $region22: #{_lambda_.4} parent=11 // pred_check_branch
        %149 = sbr.rel (%p147) target = $region24
      $region23: #{_lambda_.4} parent=11 // pred_region
        _
      $region24: #{_lambda_.4} parent=11 // pred_fallthru
        _
    $region12: #{_lambda_.4} parent=5 // pred_fallthru
      _
    %p150 = scmp.lt.s32.totalorder %s11, 2
    // Predicated region
    $region25: #{_lambda_.4} parent=5 // pred_check
      %p151 = pneg %p150
    $region26: #{_lambda_.4} parent=5 // pred_check_branch
      %153 = sbr.rel (%p151) target = $region28
    $region27: #{_lambda_.4} parent=5 // pred_region
      // Predicated region
      $region29: #{_lambda_.4} parent=27 // pred_check
        %p154 = pneg %p31
      $region30: #{_lambda_.4} parent=27 // pred_check_branch
        %156 = sbr.rel (%p154) target = $region32
      $region31: #{_lambda_.4} parent=27 // pred_region
        %s157 = smul.u32 32, %s11
        %p158 = scmp.lt.s32.totalorder %s157, 63
        %s159 = scalar_select %p158, %s157, 63
        %s160 = smul.addr %s159, 4
        %s161 = scalar_lea.vmem %s0, %s160
        %s162 = smul.u32 32, %s11
      $region32: #{_lambda_.4} parent=27 // pred_fallthru
        _
    $region28: #{_lambda_.4} parent=5 // pred_fallthru
      _
    %p163 = scmp.le.s32.totalorder 1, %s11
    %p164 = scmp.lt.s32.totalorder %s11, 3
    %p165 = pnand %p163, %p164
    %p166 = pneg %p165
    // Predicated region
    $region33: #{_lambda_.4} parent=5 // pred_check
      _
    $region34: #{_lambda_.4} parent=5 // pred_check_branch
      %168 = sbr.rel (%p165) target = $region36
    $region35: #{_lambda_.4} parent=5 // pred_region
      %s169 = ssub.s32 %s11, 1
      %s170 = smul.u32 32, %s16
      %p171 = scmp.lt.s32.totalorder %s170, 63
      %s172 = scalar_select %p171, %s170, 63
      %s173 = smul.addr %s172, 4
      %s174 = scalar_lea.vmem %s0, %s173
      %p175 = pneg %p37
      %p176 = pneg %p34
      %p177 = pneg %p58
      %p178 = pneg %p55
      %p179 = pneg %p79
      %p180 = pneg %p76
      %p181 = pneg %p100
      %p182 = pneg %p97
      %p183 = pneg %p126
      %p184 = pneg %p123
      %s185 = smul.u32 32, %s16
      %p186 = scmp.lt.s32.totalorder %s185, 63
      %s187 = scalar_select %p186, %s185, 63
      %s188 = smul.addr %s187, 4
      %s189 = scalar_lea.vmem %s4, %s188
      %s190 = smul.u32 32, %s16
      %p191 = scmp.lt.s32.totalorder %s190, 63
      %s192 = scalar_select %p191, %s190, 63
      %s193 = smul.addr %s192, 4
      %s194 = scalar_lea.vmem %s0, %s193
      %s195 = smul.u32 32, %s16
      %s196 = smul.u32 32, %s16
      %p197 = scmp.lt.s32.totalorder %s196, 63
      %s198 = scalar_select %p197, %s196, 63
      %s199 = smul.addr %s198, 4
      %s200 = scalar_lea.vmem %s4, %s199
      %s201 = smul.u32 32, %s16
      %v203 = vld [vmem:[%s194] sm:$0xf]
      %v204 = vld [vmem:[%s194 + $0x4] sm:$0xf]
      %v205 = vld [vmem:[%s194 + $0x8] sm:$0xf]
      %v206 = vld [vmem:[%s194 + $0xc] sm:$0xf]
      %v207 = vld [vmem:[%s194 + $0x10] sm:$0xf]
      %v208 = vld [vmem:[%s194 + $0x14] sm:$0xf]
      %v209 = vld [vmem:[%s194 + $0x18] sm:$0xf]
      %v210 = vld [vmem:[%s194 + $0x1c] sm:$0xf]
      %v211 = vld [vmem:[%s194 + $0x20] sm:$0xf]
      %v212 = vld [vmem:[%s194 + $0x24] sm:$0xf]
      %v213 = vld [vmem:[%s194 + $0x28] sm:$0xf]
      %v214 = vld [vmem:[%s194 + $0x2c] sm:$0xf]
      %v215 = vld [vmem:[%s194 + $0x30] sm:$0xf]
      %v216 = vld [vmem:[%s194 + $0x34] sm:$0xf]
      %v217 = vld [vmem:[%s194 + $0x38] sm:$0xf]
      %v218 = vld [vmem:[%s194 + $0x3c] sm:$0xf]
      %v219 = vld [vmem:[%s194 + $0x40] sm:$0xf]
      %v220 = vld [vmem:[%s194 + $0x44] sm:$0xf]
      %v221 = vld [vmem:[%s194 + $0x48] sm:$0xf]
      %v222 = vld [vmem:[%s194 + $0x4c] sm:$0xf]
      %v223 = vld [vmem:[%s194 + $0x50] sm:$0xf]
      %v224 = vld [vmem:[%s194 + $0x54] sm:$0xf]
      %v225 = vld [vmem:[%s194 + $0x58] sm:$0xf]
      %v226 = vld [vmem:[%s194 + $0x5c] sm:$0xf]
      %v227 = vld [vmem:[%s194 + $0x60] sm:$0xf]
      %v228 = vld [vmem:[%s194 + $0x64] sm:$0xf]
      %v229 = vld [vmem:[%s194 + $0x68] sm:$0xf]
      %v230 = vld [vmem:[%s194 + $0x6c] sm:$0xf]
      %v231 = vld [vmem:[%s194 + $0x70] sm:$0xf]
      %v232 = vld [vmem:[%s194 + $0x74] sm:$0xf]
      %v233 = vld [vmem:[%s194 + $0x78] sm:$0xf]
      %v234 = vld [vmem:[%s194 + $0x7c] sm:$0xf]
      %v235 = vld [vmem:[%s1] sm:$0x3]
      %v236 = vld [vmem:[%s2] sm:$0x1]
      %v238 = vlaneseq
      %v239 = vshrl.u32 %v238, 7
      %v240 = vsub.s32 0, %v239
      %v241 = vrot.slane %v236, %v240
      %v275 = vunpack.c.l.b16 %v203
      %v276 = vunpack.c.l.b16 %v204
      %v277 = vunpack.c.l.b16 %v205
      %v278 = vunpack.c.l.b16 %v206
      %v279 = vunpack.c.l.b16 %v207
      %v280 = vunpack.c.l.b16 %v208
      %v281 = vunpack.c.l.b16 %v209
      %v282 = vunpack.c.l.b16 %v210
      %v283 = vunpack.c.l.b16 %v211
      %v284 = vunpack.c.l.b16 %v212
      %v285 = vunpack.c.l.b16 %v213
      %v286 = vunpack.c.l.b16 %v214
      %v287 = vunpack.c.l.b16 %v215
      %v288 = vunpack.c.l.b16 %v216
      %v289 = vunpack.c.l.b16 %v217
      %v290 = vunpack.c.l.b16 %v218
      %v291 = vunpack.c.l.b16 %v219
      %v292 = vunpack.c.l.b16 %v220
      %v293 = vunpack.c.l.b16 %v221
      %v294 = vunpack.c.l.b16 %v222
      %v295 = vunpack.c.l.b16 %v223
      %v296 = vunpack.c.l.b16 %v224
      %v297 = vunpack.c.l.b16 %v225
      %v298 = vunpack.c.l.b16 %v226
      %v299 = vunpack.c.l.b16 %v227
      %v300 = vunpack.c.l.b16 %v228
      %v301 = vunpack.c.l.b16 %v229
      %v302 = vunpack.c.l.b16 %v230
      %v303 = vunpack.c.l.b16 %v231
      %v304 = vunpack.c.l.b16 %v232
      %v305 = vunpack.c.l.b16 %v233
      %v306 = vunpack.c.l.b16 %v234
      %v307 = vpack.c.b16 %v276, %v275
      %v308 = vpack.c.b16 %v278, %v277
      %v309 = vpack.c.b16 %v280, %v279
      %v310 = vpack.c.b16 %v282, %v281
      %v311 = vpack.c.b16 %v284, %v283
      %v312 = vpack.c.b16 %v286, %v285
      %v313 = vpack.c.b16 %v288, %v287
      %v314 = vpack.c.b16 %v290, %v289
      %v315 = vpack.c.b16 %v292, %v291
      %v316 = vpack.c.b16 %v294, %v293
      %v317 = vpack.c.b16 %v296, %v295
      %v318 = vpack.c.b16 %v298, %v297
      %v319 = vpack.c.b16 %v300, %v299
      %v320 = vpack.c.b16 %v302, %v301
      %v321 = vpack.c.b16 %v304, %v303
      %v322 = vpack.c.b16 %v306, %v305
      %vm323 = vcmask 31744
      %v325 = vsel %vm323, %v307, 0
      %v328 = vsel %vm323, %v308, 0
      %v331 = vsel %vm323, %v309, 0
      %v334 = vsel %vm323, %v310, 0
      %v337 = vsel %vm323, %v311, 0
      %v340 = vsel %vm323, %v312, 0
      %v343 = vsel %vm323, %v313, 0
      %v346 = vsel %vm323, %v314, 0
      %v349 = vsel %vm323, %v315, 0
      %v352 = vsel %vm323, %v316, 0
      %v355 = vsel %vm323, %v317, 0
      %v358 = vsel %vm323, %v318, 0
      %v361 = vsel %vm323, %v319, 0
      %v364 = vsel %vm323, %v320, 0
      %v367 = vsel %vm323, %v321, 0
      %v370 = vsel %vm323, %v322, 0
      %vm372 = vcmask 1041408
      %v374 = vsel %vm372, %v235, 0
      %376 = vmatprep.subr.bf16.mxu0 0
      %377 = vmatpush1.bf16.msra.mxu0 0
      %378 = vmatprep.subr.bf16.mxu0 0
      %379 = vmatpush1.bf16.msra.mxu0 0
      %380 = vmatprep.subr.bf16.mxu0 0
      %381 = vmatpush1.bf16.msra.mxu0 0
      %382 = vmatprep.subr.bf16.mxu0 0
      %383 = vmatpush1.bf16.msra.mxu0 0
      %384 = vmatprep.subr.bf16.mxu0 0
      %385 = vmatpush1.bf16.msra.mxu0 0
      %386 = vmatprep.subr.bf16.mxu0 0
      %387 = vmatpush1.bf16.msra.mxu0 0
      %388 = vmatprep.subr.bf16.mxu0 0
      %389 = vmatpush1.bf16.msra.mxu0 0
      %390 = vmatprep.subr.bf16.mxu0 0
      %391 = vmatpush1.bf16.msra.mxu0 %v374
      %392 = vmatprep.subr.bf16.mxu0 0
      %393 = vmatpush2.bf16.msra.mxu0 0
      %394 = vmatprep.subr.bf16.mxu0 0
      %395 = vmatpush2.bf16.msra.mxu0 0
      %396 = vmatprep.subr.bf16.mxu0 0
      %397 = vmatpush2.bf16.msra.mxu0 0
      %398 = vmatprep.subr.bf16.mxu0 0
      %399 = vmatpush2.bf16.msra.mxu0 0
      %400 = vmatprep.subr.bf16.mxu0 0
      %401 = vmatpush2.bf16.msra.mxu0 0
      %402 = vmatprep.subr.bf16.mxu0 0
      %403 = vmatpush2.bf16.msra.mxu0 0
      %404 = vmatprep.subr.bf16.mxu0 0
      %405 = vmatpush2.bf16.msra.mxu0 0
      %406 = vmatprep.subr.bf16.mxu0 0
      %407 = vmatpush2.bf16.msra.mxu0 0
      %408 = vmatprep.mubr.bf16.mxu0 0
      %409 = vmatmul.mubr.bf16.gmra.mxu0 %v325
      %v410 = vpop.f32.mrf.mxu0
      %v411 = vadd.f32 %v241, %v410
      %v412 = vpop.f32.mrf.mxu0
      %v413 = vpop.f32.mrf.mxu0
      %v414 = vadd.f32 %v241, %v413
      %v415 = vpop.f32.mrf.mxu0
      %416 = vmatprep.mubr.bf16.mxu0 0
      %417 = vmatmul.mubr.bf16.gmra.mxu0 %v328
      %v418 = vpop.f32.mrf.mxu0
      %v419 = vadd.f32 %v241, %v418
      %v420 = vpop.f32.mrf.mxu0
      %v421 = vpop.f32.mrf.mxu0
      %v422 = vadd.f32 %v241, %v421
      %v423 = vpop.f32.mrf.mxu0
      %424 = vmatprep.mubr.bf16.mxu0 0
      %425 = vmatmul.mubr.bf16.gmra.mxu0 %v331
      %v426 = vpop.f32.mrf.mxu0
      %v427 = vadd.f32 %v241, %v426
      %v428 = vpop.f32.mrf.mxu0
      %v429 = vpop.f32.mrf.mxu0
      %v430 = vadd.f32 %v241, %v429
      %v431 = vpop.f32.mrf.mxu0
      %432 = vmatprep.mubr.bf16.mxu0 0
      %433 = vmatmul.mubr.bf16.gmra.mxu0 %v334
      %v434 = vpop.f32.mrf.mxu0
      %v435 = vadd.f32 %v241, %v434
      %v436 = vpop.f32.mrf.mxu0
      %v437 = vpop.f32.mrf.mxu0
      %v438 = vadd.f32 %v241, %v437
      %v439 = vpop.f32.mrf.mxu0
      %440 = vmatprep.mubr.bf16.mxu0 0
      %441 = vmatmul.mubr.bf16.gmra.mxu0 %v337
      %v442 = vpop.f32.mrf.mxu0
      %v443 = vadd.f32 %v241, %v442
      %v444 = vpop.f32.mrf.mxu0
      %v445 = vpop.f32.mrf.mxu0
      %v446 = vadd.f32 %v241, %v445
      %v447 = vpop.f32.mrf.mxu0
      %448 = vmatprep.mubr.bf16.mxu0 0
      %449 = vmatmul.mubr.bf16.gmra.mxu0 %v340
      %v450 = vpop.f32.mrf.mxu0
      %v451 = vadd.f32 %v241, %v450
      %v452 = vpop.f32.mrf.mxu0
      %v453 = vpop.f32.mrf.mxu0
      %v454 = vadd.f32 %v241, %v453
      %v455 = vpop.f32.mrf.mxu0
      %456 = vmatprep.mubr.bf16.mxu0 0
      %457 = vmatmul.mubr.bf16.gmra.mxu0 %v343
      %v458 = vpop.f32.mrf.mxu0
      %v459 = vadd.f32 %v241, %v458
      %v460 = vpop.f32.mrf.mxu0
      %v461 = vpop.f32.mrf.mxu0
      %v462 = vadd.f32 %v241, %v461
      %v463 = vpop.f32.mrf.mxu0
      %464 = vmatprep.mubr.bf16.mxu0 0
      %465 = vmatmul.mubr.bf16.gmra.mxu0 %v346
      %v466 = vpop.f32.mrf.mxu0
      %v467 = vadd.f32 %v241, %v466
      %v468 = vpop.f32.mrf.mxu0
      %v469 = vpop.f32.mrf.mxu0
      %v470 = vadd.f32 %v241, %v469
      %v471 = vpop.f32.mrf.mxu0
      %472 = vmatprep.mubr.bf16.mxu0 0
      %473 = vmatmul.mubr.bf16.gmra.mxu0 %v349
      %v474 = vpop.f32.mrf.mxu0
      %v475 = vadd.f32 %v241, %v474
      %v476 = vpop.f32.mrf.mxu0
      %v477 = vpop.f32.mrf.mxu0
      %v478 = vadd.f32 %v241, %v477
      %v479 = vpop.f32.mrf.mxu0
      %480 = vmatprep.mubr.bf16.mxu0 0
      %481 = vmatmul.mubr.bf16.gmra.mxu0 %v352
      %v482 = vpop.f32.mrf.mxu0
      %v483 = vadd.f32 %v241, %v482
      %v484 = vpop.f32.mrf.mxu0
      %v485 = vpop.f32.mrf.mxu0
      %v486 = vadd.f32 %v241, %v485
      %v487 = vpop.f32.mrf.mxu0
      %488 = vmatprep.mubr.bf16.mxu0 0
      %489 = vmatmul.mubr.bf16.gmra.mxu0 %v355
      %v490 = vpop.f32.mrf.mxu0
      %v491 = vadd.f32 %v241, %v490
      %v492 = vpop.f32.mrf.mxu0
      %v493 = vpop.f32.mrf.mxu0
      %v494 = vadd.f32 %v241, %v493
      %v495 = vpop.f32.mrf.mxu0
      %496 = vmatprep.mubr.bf16.mxu0 0
      %497 = vmatmul.mubr.bf16.gmra.mxu0 %v358
      %v498 = vpop.f32.mrf.mxu0
      %v499 = vadd.f32 %v241, %v498
      %v500 = vpop.f32.mrf.mxu0
      %v501 = vpop.f32.mrf.mxu0
      %v502 = vadd.f32 %v241, %v501
      %v503 = vpop.f32.mrf.mxu0
      %504 = vmatprep.mubr.bf16.mxu0 0
      %505 = vmatmul.mubr.bf16.gmra.mxu0 %v361
      %v506 = vpop.f32.mrf.mxu0
      %v507 = vadd.f32 %v241, %v506
      %v508 = vpop.f32.mrf.mxu0
      %v509 = vpop.f32.mrf.mxu0
      %v510 = vadd.f32 %v241, %v509
      %v511 = vpop.f32.mrf.mxu0
      %512 = vmatprep.mubr.bf16.mxu0 0
      %513 = vmatmul.mubr.bf16.gmra.mxu0 %v364
      %v514 = vpop.f32.mrf.mxu0
      %v515 = vadd.f32 %v241, %v514
      %v516 = vpop.f32.mrf.mxu0
      %v517 = vpop.f32.mrf.mxu0
      %v518 = vadd.f32 %v241, %v517
      %v519 = vpop.f32.mrf.mxu0
      %520 = vmatprep.mubr.bf16.mxu0 0
      %521 = vmatmul.mubr.bf16.gmra.mxu0 %v367
      %v522 = vpop.f32.mrf.mxu0
      %v523 = vadd.f32 %v241, %v522
      %v524 = vpop.f32.mrf.mxu0
      %v525 = vpop.f32.mrf.mxu0
      %v526 = vadd.f32 %v241, %v525
      %v527 = vpop.f32.mrf.mxu0
      %528 = vmatprep.mubr.bf16.mxu0 0
      %529 = vmatmul.mubr.bf16.gmra.mxu0 %v370
      %v530 = vpop.f32.mrf.mxu0
      %v531 = vadd.f32 %v241, %v530
      %v532 = vpop.f32.mrf.mxu0
      %v533 = vpop.f32.mrf.mxu0
      %v534 = vadd.f32 %v241, %v533
      %v535 = vpop.f32.mrf.mxu0
      %536 = vdwg.mxu0
      %s537 = sld [smem:[#allocation2]]
      %vm538 = vcmp.ge.f32.partialorder %v411, 0.0
      %vm539 = vcmp.ge.f32.partialorder %v414, 0.0
      %vm540 = vcmp.ge.f32.partialorder %v419, 0.0
      %vm541 = vcmp.ge.f32.partialorder %v422, 0.0
      %vm542 = vcmp.ge.f32.partialorder %v427, 0.0
      %vm543 = vcmp.ge.f32.partialorder %v430, 0.0
      %vm544 = vcmp.ge.f32.partialorder %v435, 0.0
      %vm545 = vcmp.ge.f32.partialorder %v438, 0.0
      %vm546 = vcmp.ge.f32.partialorder %v443, 0.0
      %vm547 = vcmp.ge.f32.partialorder %v446, 0.0
      %vm548 = vcmp.ge.f32.partialorder %v451, 0.0
      %vm549 = vcmp.ge.f32.partialorder %v454, 0.0
      %vm550 = vcmp.ge.f32.partialorder %v459, 0.0
      %vm551 = vcmp.ge.f32.partialorder %v462, 0.0
      %vm552 = vcmp.ge.f32.partialorder %v467, 0.0
      %vm553 = vcmp.ge.f32.partialorder %v470, 0.0
      %vm554 = vcmp.ge.f32.partialorder %v475, 0.0
      %vm555 = vcmp.ge.f32.partialorder %v478, 0.0
      %vm556 = vcmp.ge.f32.partialorder %v483, 0.0
      %vm557 = vcmp.ge.f32.partialorder %v486, 0.0
      %vm558 = vcmp.ge.f32.partialorder %v491, 0.0
      %vm559 = vcmp.ge.f32.partialorder %v494, 0.0
      %vm560 = vcmp.ge.f32.partialorder %v499, 0.0
      %vm561 = vcmp.ge.f32.partialorder %v502, 0.0
      %vm562 = vcmp.ge.f32.partialorder %v507, 0.0
      %vm563 = vcmp.ge.f32.partialorder %v510, 0.0
      %vm564 = vcmp.ge.f32.partialorder %v515, 0.0
      %vm565 = vcmp.ge.f32.partialorder %v518, 0.0
      %vm566 = vcmp.ge.f32.partialorder %v523, 0.0
      %vm567 = vcmp.ge.f32.partialorder %v526, 0.0
      %vm568 = vcmp.ge.f32.partialorder %v531, 0.0
      %vm569 = vcmp.ge.f32.partialorder %v534, 0.0
      %v570 = vstv %s537
      %v571 = vmul.f32 %v570, %v411
      %v572 = vmul.f32 %v570, %v414
      %v573 = vmul.f32 %v570, %v419
      %v574 = vmul.f32 %v570, %v422
      %v575 = vmul.f32 %v570, %v427
      %v576 = vmul.f32 %v570, %v430
      %v577 = vmul.f32 %v570, %v435
      %v578 = vmul.f32 %v570, %v438
      %v579 = vmul.f32 %v570, %v443
      %v580 = vmul.f32 %v570, %v446
      %v581 = vmul.f32 %v570, %v451
      %v582 = vmul.f32 %v570, %v454
      %v583 = vmul.f32 %v570, %v459
      %v584 = vmul.f32 %v570, %v462
      %v585 = vmul.f32 %v570, %v467
      %v586 = vmul.f32 %v570, %v470
      %v587 = vmul.f32 %v570, %v475
      %v588 = vmul.f32 %v570, %v478
      %v589 = vmul.f32 %v570, %v483
      %v590 = vmul.f32 %v570, %v486
      %v591 = vmul.f32 %v570, %v491
      %v592 = vmul.f32 %v570, %v494
      %v593 = vmul.f32 %v570, %v499
      %v594 = vmul.f32 %v570, %v502
      %v595 = vmul.f32 %v570, %v507
      %v596 = vmul.f32 %v570, %v510
      %v597 = vmul.f32 %v570, %v515
      %v598 = vmul.f32 %v570, %v518
      %v599 = vmul.f32 %v570, %v523
      %v600 = vmul.f32 %v570, %v526
      %v601 = vmul.f32 %v570, %v531
      %v602 = vmul.f32 %v570, %v534
      %v603 = vsel %vm538, %v411, %v571
      %v604 = vsel %vm539, %v414, %v572
      %v605 = vsel %vm540, %v419, %v573
      %v606 = vsel %vm541, %v422, %v574
      %v607 = vsel %vm542, %v427, %v575
      %v608 = vsel %vm543, %v430, %v576
      %v609 = vsel %vm544, %v435, %v577
      %v610 = vsel %vm545, %v438, %v578
      %v611 = vsel %vm546, %v443, %v579
      %v612 = vsel %vm547, %v446, %v580
      %v613 = vsel %vm548, %v451, %v581
      %v614 = vsel %vm549, %v454, %v582
      %v615 = vsel %vm550, %v459, %v583
      %v616 = vsel %vm551, %v462, %v584
      %v617 = vsel %vm552, %v467, %v585
      %v618 = vsel %vm553, %v470, %v586
      %v619 = vsel %vm554, %v475, %v587
      %v620 = vsel %vm555, %v478, %v588
      %v621 = vsel %vm556, %v483, %v589
      %v622 = vsel %vm557, %v486, %v590
      %v623 = vsel %vm558, %v491, %v591
      %v624 = vsel %vm559, %v494, %v592
      %v625 = vsel %vm560, %v499, %v593
      %v626 = vsel %vm561, %v502, %v594
      %v627 = vsel %vm562, %v507, %v595
      %v628 = vsel %vm563, %v510, %v596
      %v629 = vsel %vm564, %v515, %v597
      %v630 = vsel %vm565, %v518, %v598
      %v631 = vsel %vm566, %v523, %v599
      %v632 = vsel %vm567, %v526, %v600
      %v633 = vsel %vm568, %v531, %v601
      %v634 = vsel %vm569, %v534, %v602
      %v635 = vpack.c.bf16 %v604, %v603
      %v636 = vpack.c.bf16 %v606, %v605
      %v637 = vpack.c.bf16 %v608, %v607
      %v638 = vpack.c.bf16 %v610, %v609
      %v639 = vpack.c.bf16 %v612, %v611
      %v640 = vpack.c.bf16 %v614, %v613
      %v641 = vpack.c.bf16 %v616, %v615
      %v642 = vpack.c.bf16 %v618, %v617
      %v643 = vpack.c.bf16 %v620, %v619
      %v644 = vpack.c.bf16 %v622, %v621
      %v645 = vpack.c.bf16 %v624, %v623
      %v646 = vpack.c.bf16 %v626, %v625
      %v647 = vpack.c.bf16 %v628, %v627
      %v648 = vpack.c.bf16 %v630, %v629
      %v649 = vpack.c.bf16 %v632, %v631
      %v650 = vpack.c.bf16 %v634, %v633
      %v667 = vunpack.c.l.b16 %v635
      %v668 = vunpack.c.h.b16 %v635
      %v669 = vunpack.c.l.b16 %v636
      %v670 = vunpack.c.h.b16 %v636
      %v671 = vunpack.c.l.b16 %v637
      %v672 = vunpack.c.h.b16 %v637
      %v673 = vunpack.c.l.b16 %v638
      %v674 = vunpack.c.h.b16 %v638
      %v675 = vunpack.c.l.b16 %v639
      %v676 = vunpack.c.h.b16 %v639
      %v677 = vunpack.c.l.b16 %v640
      %v678 = vunpack.c.h.b16 %v640
      %v679 = vunpack.c.l.b16 %v641
      %v680 = vunpack.c.h.b16 %v641
      %v681 = vunpack.c.l.b16 %v642
      %v682 = vunpack.c.h.b16 %v642
      %v683 = vunpack.c.l.b16 %v643
      %v684 = vunpack.c.h.b16 %v643
      %v685 = vunpack.c.l.b16 %v644
      %v686 = vunpack.c.h.b16 %v644
      %v687 = vunpack.c.l.b16 %v645
      %v688 = vunpack.c.h.b16 %v645
      %v689 = vunpack.c.l.b16 %v646
      %v690 = vunpack.c.h.b16 %v646
      %v691 = vunpack.c.l.b16 %v647
      %v692 = vunpack.c.h.b16 %v647
      %v693 = vunpack.c.l.b16 %v648
      %v694 = vunpack.c.h.b16 %v648
      %v695 = vunpack.c.l.b16 %v649
      %v696 = vunpack.c.h.b16 %v649
      %v697 = vunpack.c.l.b16 %v650
      %v698 = vunpack.c.h.b16 %v650
      %v699 = vpack.c.b16 %v667, %v667
      %v700 = vpack.c.b16 %v668, %v668
      %v701 = vpack.c.b16 %v669, %v669
      %v702 = vpack.c.b16 %v670, %v670
      %v703 = vpack.c.b16 %v671, %v671
      %v704 = vpack.c.b16 %v672, %v672
      %v705 = vpack.c.b16 %v673, %v673
      %v706 = vpack.c.b16 %v674, %v674
      %v707 = vpack.c.b16 %v675, %v675
      %v708 = vpack.c.b16 %v676, %v676
      %v709 = vpack.c.b16 %v677, %v677
      %v710 = vpack.c.b16 %v678, %v678
      %v711 = vpack.c.b16 %v679, %v679
      %v712 = vpack.c.b16 %v680, %v680
      %v713 = vpack.c.b16 %v681, %v681
      %v714 = vpack.c.b16 %v682, %v682
      %v715 = vpack.c.b16 %v683, %v683
      %v716 = vpack.c.b16 %v684, %v684
      %v717 = vpack.c.b16 %v685, %v685
      %v718 = vpack.c.b16 %v686, %v686
      %v719 = vpack.c.b16 %v687, %v687
      %v720 = vpack.c.b16 %v688, %v688
      %v721 = vpack.c.b16 %v689, %v689
      %v722 = vpack.c.b16 %v690, %v690
      %v723 = vpack.c.b16 %v691, %v691
      %v724 = vpack.c.b16 %v692, %v692
      %v725 = vpack.c.b16 %v693, %v693
      %v726 = vpack.c.b16 %v694, %v694
      %v727 = vpack.c.b16 %v695, %v695
      %v728 = vpack.c.b16 %v696, %v696
      %v729 = vpack.c.b16 %v697, %v697
      %v730 = vpack.c.b16 %v698, %v698
      %763 = vst [vmem:[%s200] sm:$0xf] %v699
      %764 = vst [vmem:[%s200 + $0x4] sm:$0xf] %v700
      %765 = vst [vmem:[%s200 + $0x8] sm:$0xf] %v701
      %766 = vst [vmem:[%s200 + $0xc] sm:$0xf] %v702
      %767 = vst [vmem:[%s200 + $0x10] sm:$0xf] %v703
      %768 = vst [vmem:[%s200 + $0x14] sm:$0xf] %v704
      %769 = vst [vmem:[%s200 + $0x18] sm:$0xf] %v705
      %770 = vst [vmem:[%s200 + $0x1c] sm:$0xf] %v706
      %771 = vst [vmem:[%s200 + $0x20] sm:$0xf] %v707
      %772 = vst [vmem:[%s200 + $0x24] sm:$0xf] %v708
      %773 = vst [vmem:[%s200 + $0x28] sm:$0xf] %v709
      %774 = vst [vmem:[%s200 + $0x2c] sm:$0xf] %v710
      %775 = vst [vmem:[%s200 + $0x30] sm:$0xf] %v711
      %776 = vst [vmem:[%s200 + $0x34] sm:$0xf] %v712
      %777 = vst [vmem:[%s200 + $0x38] sm:$0xf] %v713
      %778 = vst [vmem:[%s200 + $0x3c] sm:$0xf] %v714
      %779 = vst [vmem:[%s200 + $0x40] sm:$0xf] %v715
      %780 = vst [vmem:[%s200 + $0x44] sm:$0xf] %v716
      %781 = vst [vmem:[%s200 + $0x48] sm:$0xf] %v717
      %782 = vst [vmem:[%s200 + $0x4c] sm:$0xf] %v718
      %783 = vst [vmem:[%s200 + $0x50] sm:$0xf] %v719
      %784 = vst [vmem:[%s200 + $0x54] sm:$0xf] %v720
      %785 = vst [vmem:[%s200 + $0x58] sm:$0xf] %v721
      %786 = vst [vmem:[%s200 + $0x5c] sm:$0xf] %v722
      %787 = vst [vmem:[%s200 + $0x60] sm:$0xf] %v723
      %788 = vst [vmem:[%s200 + $0x64] sm:$0xf] %v724
      %789 = vst [vmem:[%s200 + $0x68] sm:$0xf] %v725
      %790 = vst [vmem:[%s200 + $0x6c] sm:$0xf] %v726
      %791 = vst [vmem:[%s200 + $0x70] sm:$0xf] %v727
      %792 = vst [vmem:[%s200 + $0x74] sm:$0xf] %v728
      %793 = vst [vmem:[%s200 + $0x78] sm:$0xf] %v729
      %794 = vst [vmem:[%s200 + $0x7c] sm:$0xf] %v730
      %s795 = smul.u32 32, %s16
      %p796 = scmp.lt.s32.totalorder %s795, 63
      %s797 = scalar_select %p796, %s795, 63
      %s798 = smul.addr %s797, 4
      %s799 = scalar_lea.vmem %s4, %s798
      // Predicated region
      $region37: #{_lambda_.4} parent=35 // pred_check
        %p800 = pneg %p123
      $region38: #{_lambda_.4} parent=35 // pred_check_branch
        %802 = sbr.rel (%p800) target = $region40
      $region39: #{_lambda_.4} parent=35 // pred_region
        %s803 = smul.u32 32, %s16
      $region40: #{_lambda_.4} parent=35 // pred_fallthru
        _
    $region36: #{_lambda_.4} parent=5 // pred_fallthru
      _
    %p804 = scmp.le.s32.totalorder 2, %s11
    // Predicated region
    $region41: #{_lambda_.4} parent=5 // pred_check
      %p805 = pneg %p804
    $region42: #{_lambda_.4} parent=5 // pred_check_branch
      %807 = sbr.rel (%p805) target = $region44
    $region43: #{_lambda_.4} parent=5 // pred_region
      %s808 = ssub.s32 %s11, 2
      // Predicated region
      $region45: #{_lambda_.4} parent=43 // pred_check
        %p809 = pneg %p129
      $region46: #{_lambda_.4} parent=43 // pred_check_branch
        %811 = sbr.rel (%p809) target = $region48
      $region47: #{_lambda_.4} parent=43 // pred_region
        %s812 = smul.u32 32, %s17
        %p813 = scmp.lt.s32.totalorder %s812, 63
        %s814 = scalar_select %p813, %s812, 63
        %s815 = smul.addr %s814, 4
        %s816 = scalar_lea.vmem %s4, %s815
      $region48: #{_lambda_.4} parent=43 // pred_fallthru
        _
    $region44: #{_lambda_.4} parent=5 // pred_fallthru
      _
  $region6: #{_lambda_.4} parent=0 // loop_footer
    %s15 = sadd.s32 1, %s11
  $region7: #{_lambda_.4} parent=0 // loop_footer_branch
    %10 = sbr.rel target = $region3
  $region8: #{_lambda_.4} parent=0 // loop_exit
    _

// kernel: _lambda_.5
$region0: #{_lambda_.5}
  #allocation0 [shape = 'u32[]', space=smem, size = 0x4, offset = 0x4, fixed_abs, tag = 'smem constant byte address 0x4 - core index']
  #allocation1 [shape = 'u32[144,128]{1,0:T(1,128)}', space=vmem, size = 0x12000, scoped, tag = 'internal scratch']
  #allocation2 [shape = 'f32[1]{0:T(128)S(6)}', space=smem, size = 0x200, scoped, tag = 'scoped memory for _lambda_.5']
  %s0 = inlined_call_operand.vmem [shape: bf16[32,256], index: 0, kind: input, shape index: {}]
  %s1 = inlined_call_operand.vmem [shape: bf16[256,128], index: 1, kind: input, shape index: {}]
  %s2 = inlined_call_operand.vmem [shape: f32[1,128], index: 2, kind: input, shape index: {}]
  %s3 = inlined_call_operand.<no memory space> [shape: f32[1], index: 3, kind: input, shape index: {}]
  %s4 = inlined_call_operand.vmem [shape: bf16[32,128], index: 4, kind: output, shape index: {}]
  %s5 = sld [smem:[#allocation0]]
  $region49: #{_lambda_.5} parent=0
    _
  %s7 = ssub.s32 1, %s5
  %s8 = scalar_select 0, %s7, %s5
  %9 = sst [smem:[#allocation2]] %s3
  loop: start=0, step=1, limit=4
  $region2: #{_lambda_.5} parent=0 // loop_pre_header
    _
  $region3: #{_lambda_.5} parent=0 // loop_header
    %s11 = sphi 0, %s15
    %p12 = scmp.ge.s32.totalorder %s11, 4
    %s21 = sphi 0, %s23
    %s24 = sphi 0, %s21
    %s25 = sphi 0, %s24
    %s41 = sphi 0, %s25
    %s45 = sphi 0, %s45
    %s47 = sphi 0, %s45
    %s48 = sphi 0, %s47
    %s62 = sphi 0, %s48
    %s66 = sphi 0, %s66
    %s68 = sphi 0, %s66
    %s69 = sphi 0, %s68
    %s83 = sphi 0, %s69
    %s87 = sphi 0, %s87
    %s89 = sphi 0, %s87
    %s90 = sphi 0, %s89
    %s104 = sphi 0, %s90
    %s110 = sphi 0, %s112
    %s113 = sphi 0, %s110
    %s114 = sphi 0, %s113
    %s130 = sphi 0, %s114
  $region4: #{_lambda_.5} parent=0 // loop_header_branch
    %14 = sbr.rel (%p12) target = $region8
  $region5: #{_lambda_.5} parent=0 // loop_body
    %s16 = ssub.s32 %s11, 1
    %s17 = ssub.s32 %s11, 2
    %s18 = sadd.s32 %s11, 1
    %s19 = ssub.s32 %s11, %s18
    %p20 = scmp.eq.s32.totalorder %s19, 0
    %s22 = sadd.s32 %s21, 1
    %s23 = scalar_select %p20, %s21, %s22
    %p26 = pneg %p20
    %p27 = scmp.eq.s32.totalorder %s11, 1
    %p28 = por %p26, %p27
    %p29 = scmp.ne.s32.totalorder %s21, %s24
    %p30 = scmp.eq.s32.totalorder %s11, 0
    %p31 = por %p29, %p30
    %p32 = scmp.ne.s32.totalorder %s21, %s24
    %p33 = scmp.eq.s32.totalorder %s16, 1
    %p34 = por %p32, %p33
    %p35 = scmp.ne.s32.totalorder %s24, %s25
    %p36 = scmp.eq.s32.totalorder %s16, 0
    %p37 = por %p35, %p36
    %p38 = scmp.ne.s32.totalorder %s24, %s25
    %p39 = scmp.eq.s32.totalorder %s17, 1
    %p40 = por %p38, %p39
    %p42 = scmp.ne.s32.totalorder %s25, %s41
    %p43 = scmp.eq.s32.totalorder %s17, 0
    %p44 = por %p42, %p43
    %s46 = sadd.s32 %s45, 1
    %p49 = scmp.eq.s32.totalorder %s11, 1
    %p50 = scmp.ne.s32.totalorder %s45, %s47
    %p51 = scmp.eq.s32.totalorder %s11, 0
    %p52 = por %p50, %p51
    %p53 = scmp.ne.s32.totalorder %s45, %s47
    %p54 = scmp.eq.s32.totalorder %s16, 1
    %p55 = por %p53, %p54
    %p56 = scmp.ne.s32.totalorder %s47, %s48
    %p57 = scmp.eq.s32.totalorder %s16, 0
    %p58 = por %p56, %p57
    %p59 = scmp.ne.s32.totalorder %s47, %s48
    %p60 = scmp.eq.s32.totalorder %s17, 1
    %p61 = por %p59, %p60
    %p63 = scmp.ne.s32.totalorder %s48, %s62
    %p64 = scmp.eq.s32.totalorder %s17, 0
    %p65 = por %p63, %p64
    %s67 = sadd.s32 %s66, 1
    %p70 = scmp.eq.s32.totalorder %s11, 1
    %p71 = scmp.ne.s32.totalorder %s66, %s68
    %p72 = scmp.eq.s32.totalorder %s11, 0
    %p73 = por %p71, %p72
    %p74 = scmp.ne.s32.totalorder %s66, %s68
    %p75 = scmp.eq.s32.totalorder %s16, 1
    %p76 = por %p74, %p75
    %p77 = scmp.ne.s32.totalorder %s68, %s69
    %p78 = scmp.eq.s32.totalorder %s16, 0
    %p79 = por %p77, %p78
    %p80 = scmp.ne.s32.totalorder %s68, %s69
    %p81 = scmp.eq.s32.totalorder %s17, 1
    %p82 = por %p80, %p81
    %p84 = scmp.ne.s32.totalorder %s69, %s83
    %p85 = scmp.eq.s32.totalorder %s17, 0
    %p86 = por %p84, %p85
    %s88 = sadd.s32 %s87, 1
    %p91 = scmp.eq.s32.totalorder %s11, 1
    %p92 = scmp.ne.s32.totalorder %s87, %s89
    %p93 = scmp.eq.s32.totalorder %s11, 0
    %p94 = por %p92, %p93
    %p95 = scmp.ne.s32.totalorder %s87, %s89
    %p96 = scmp.eq.s32.totalorder %s16, 1
    %p97 = por %p95, %p96
    %p98 = scmp.ne.s32.totalorder %s89, %s90
    %p99 = scmp.eq.s32.totalorder %s16, 0
    %p100 = por %p98, %p99
    %p101 = scmp.ne.s32.totalorder %s89, %s90
    %p102 = scmp.eq.s32.totalorder %s17, 1
    %p103 = por %p101, %p102
    %p105 = scmp.ne.s32.totalorder %s90, %s104
    %p106 = scmp.eq.s32.totalorder %s17, 0
    %p107 = por %p105, %p106
    %s108 = ssub.s32 %s11, %s18
    %p109 = scmp.eq.s32.totalorder %s108, 0
    %s111 = sadd.s32 %s110, 1
    %s112 = scalar_select %p109, %s110, %s111
    %p115 = pneg %p109
    %p116 = scmp.eq.s32.totalorder %s11, 1
    %p117 = por %p115, %p116
    %p118 = scmp.ne.s32.totalorder %s110, %s113
    %p119 = scmp.eq.s32.totalorder %s11, 0
    %p120 = por %p118, %p119
    %p121 = scmp.ne.s32.totalorder %s110, %s113
    %p122 = scmp.eq.s32.totalorder %s16, 1
    %p123 = por %p121, %p122
    %p124 = scmp.ne.s32.totalorder %s113, %s114
    %p125 = scmp.eq.s32.totalorder %s16, 0
    %p126 = por %p124, %p125
    %p127 = scmp.ne.s32.totalorder %s113, %s114
    %p128 = scmp.eq.s32.totalorder %s17, 1
    %p129 = por %p127, %p128
    %p131 = scmp.ne.s32.totalorder %s114, %s130
    %p132 = scmp.eq.s32.totalorder %s17, 0
    %p133 = por %p131, %p132
    %p134 = scmp.le.s32.totalorder 1, %s11
    %p135 = scmp.lt.s32.totalorder %s11, 3
    %p136 = pnand %p134, %p135
    %p137 = pneg %p136
    // Predicated region
    $region9: #{_lambda_.5} parent=5 // pred_check
      _
    $region10: #{_lambda_.5} parent=5 // pred_check_branch
      %139 = sbr.rel (%p136) target = $region12
    $region11: #{_lambda_.5} parent=5 // pred_region
      %s140 = ssub.s32 %s11, 1
      // Predicated region
      $region13: #{_lambda_.5} parent=11 // pred_check
        %p141 = pneg %p58
      $region14: #{_lambda_.5} parent=11 // pred_check_branch
        %143 = sbr.rel (%p141) target = $region16
      $region15: #{_lambda_.5} parent=11 // pred_region
        _
      $region16: #{_lambda_.5} parent=11 // pred_fallthru
        _
      // Predicated region
      $region17: #{_lambda_.5} parent=11 // pred_check
        %p144 = pneg %p79
      $region18: #{_lambda_.5} parent=11 // pred_check_branch
        %146 = sbr.rel (%p144) target = $region20
      $region19: #{_lambda_.5} parent=11 // pred_region
        _
      $region20: #{_lambda_.5} parent=11 // pred_fallthru
        _
      // Predicated region
      $region21: #{_lambda_.5} parent=11 // pred_check
        %p147 = pneg %p100
      $region22: #{_lambda_.5} parent=11 // pred_check_branch
        %149 = sbr.rel (%p147) target = $region24
      $region23: #{_lambda_.5} parent=11 // pred_region
        _
      $region24: #{_lambda_.5} parent=11 // pred_fallthru
        _
    $region12: #{_lambda_.5} parent=5 // pred_fallthru
      _
    %p150 = scmp.lt.s32.totalorder %s11, 2
    // Predicated region
    $region25: #{_lambda_.5} parent=5 // pred_check
      %p151 = pneg %p150
    $region26: #{_lambda_.5} parent=5 // pred_check_branch
      %153 = sbr.rel (%p151) target = $region28
    $region27: #{_lambda_.5} parent=5 // pred_region
      // Predicated region
      $region29: #{_lambda_.5} parent=27 // pred_check
        %p154 = pneg %p31
      $region30: #{_lambda_.5} parent=27 // pred_check_branch
        %156 = sbr.rel (%p154) target = $region32
      $region31: #{_lambda_.5} parent=27 // pred_region
        %s157 = smul.u32 2, %s11
        %p158 = scmp.lt.s32.totalorder %s157, 3
        %s159 = scalar_select %p158, %s157, 3
        %s160 = smul.addr %s159, 2
        %s161 = smul.addr %s160, 4
        %s162 = scalar_lea.vmem %s0, %s161
        %s163 = smul.u32 2, %s11
      $region32: #{_lambda_.5} parent=27 // pred_fallthru
        _
    $region28: #{_lambda_.5} parent=5 // pred_fallthru
      _
    %p164 = scmp.le.s32.totalorder 1, %s11
    %p165 = scmp.lt.s32.totalorder %s11, 3
    %p166 = pnand %p164, %p165
    %p167 = pneg %p166
    // Predicated region
    $region33: #{_lambda_.5} parent=5 // pred_check
      _
    $region34: #{_lambda_.5} parent=5 // pred_check_branch
      %169 = sbr.rel (%p166) target = $region36
    $region35: #{_lambda_.5} parent=5 // pred_region
      %s170 = ssub.s32 %s11, 1
      %s171 = smul.u32 2, %s16
      %p172 = scmp.lt.s32.totalorder %s171, 3
      %s173 = scalar_select %p172, %s171, 3
      %s174 = smul.addr %s173, 2
      %s175 = smul.addr %s174, 4
      %s176 = scalar_lea.vmem %s0, %s175
      %p177 = pneg %p37
      %p178 = pneg %p34
      %p179 = pneg %p58
      %p180 = pneg %p55
      %p181 = pneg %p79
      %p182 = pneg %p76
      %p183 = pneg %p100
      %p184 = pneg %p97
      %p185 = pneg %p126
      %p186 = pneg %p123
      %s187 = smul.u32 2, %s16
      %p188 = scmp.lt.s32.totalorder %s187, 3
      %s189 = scalar_select %p188, %s187, 3
      %s190 = smul.addr %s189, 4
      %s191 = scalar_lea.vmem %s4, %s190
      %s192 = smul.u32 2, %s16
      %p193 = scmp.lt.s32.totalorder %s192, 3
      %s194 = scalar_select %p193, %s192, 3
      %s195 = smul.addr %s194, 2
      %s196 = smul.addr %s195, 4
      %s197 = scalar_lea.vmem %s0, %s196
      %s198 = smul.u32 2, %s16
      %s199 = smul.u32 2, %s16
      %p200 = scmp.lt.s32.totalorder %s199, 3
      %s201 = scalar_select %p200, %s199, 3
      %s202 = smul.addr %s201, 4
      %s203 = scalar_lea.vmem %s4, %s202
      %s204 = smul.u32 2, %s16
      %v206 = vld [vmem:[%s197] sm:$0xff]
      %v207 = vld [vmem:[%s197 + $0x8] sm:$0xff]
      %v208 = vld [vmem:[%s1] sm:$0xf]
      %v209 = vld [vmem:[%s1 + $0x4] sm:$0xf]
      %v210 = vld [vmem:[%s1 + $0x8] sm:$0xf]
      %v211 = vld [vmem:[%s1 + $0xc] sm:$0xf]
      %v212 = vld [vmem:[%s1 + $0x10] sm:$0xf]
      %v213 = vld [vmem:[%s1 + $0x14] sm:$0xf]
      %v214 = vld [vmem:[%s1 + $0x18] sm:$0xf]
      %v215 = vld [vmem:[%s1 + $0x1c] sm:$0xf]
      %v216 = vld [vmem:[%s1 + $0x20] sm:$0xf]
      %v217 = vld [vmem:[%s1 + $0x24] sm:$0xf]
      %v218 = vld [vmem:[%s1 + $0x28] sm:$0xf]
      %v219 = vld [vmem:[%s1 + $0x2c] sm:$0xf]
      %v220 = vld [vmem:[%s1 + $0x30] sm:$0xf]
      %v221 = vld [vmem:[%s1 + $0x34] sm:$0xf]
      %v222 = vld [vmem:[%s1 + $0x38] sm:$0xf]
      %v223 = vld [vmem:[%s1 + $0x3c] sm:$0xf]
      %v224 = vld [vmem:[%s1 + $0x40] sm:$0xf]
      %v225 = vld [vmem:[%s1 + $0x44] sm:$0xf]
      %v226 = vld [vmem:[%s1 + $0x48] sm:$0xf]
      %v227 = vld [vmem:[%s1 + $0x4c] sm:$0xf]
      %v228 = vld [vmem:[%s1 + $0x50] sm:$0xf]
      %v229 = vld [vmem:[%s1 + $0x54] sm:$0xf]
      %v230 = vld [vmem:[%s1 + $0x58] sm:$0xf]
      %v231 = vld [vmem:[%s1 + $0x5c] sm:$0xf]
      %v232 = vld [vmem:[%s1 + $0x60] sm:$0xf]
      %v233 = vld [vmem:[%s1 + $0x64] sm:$0xf]
      %v234 = vld [vmem:[%s1 + $0x68] sm:$0xf]
      %v235 = vld [vmem:[%s1 + $0x6c] sm:$0xf]
      %v236 = vld [vmem:[%s1 + $0x70] sm:$0xf]
      %v237 = vld [vmem:[%s1 + $0x74] sm:$0xf]
      %v238 = vld [vmem:[%s1 + $0x78] sm:$0xf]
      %v239 = vld [vmem:[%s1 + $0x7c] sm:$0xf]
      %v240 = vld [vmem:[%s2] sm:$0x1]
      %v242 = vlaneseq
      %v243 = vshrl.u32 %v242, 7
      %v244 = vsub.s32 0, %v243
      %v245 = vrot.slane %v240, %v244
      %v249 = vunpack.c.l.b16 %v206
      %v250 = vunpack.c.h.b16 %v206
      %v251 = vunpack.c.l.b16 %v207
      %v252 = vunpack.c.h.b16 %v207
      %v253 = vpack.c.b16 %v251, %v249
      %v254 = vpack.c.b16 %v252, %v250
      %v289 = vunpack.c.l.b16 %v208
      %v290 = vunpack.c.l.b16 %v209
      %v291 = vunpack.c.l.b16 %v210
      %v292 = vunpack.c.l.b16 %v211
      %v293 = vunpack.c.l.b16 %v212
      %v294 = vunpack.c.l.b16 %v213
      %v295 = vunpack.c.l.b16 %v214
      %v296 = vunpack.c.l.b16 %v215
      %v297 = vunpack.c.l.b16 %v216
      %v298 = vunpack.c.l.b16 %v217
      %v299 = vunpack.c.l.b16 %v218
      %v300 = vunpack.c.l.b16 %v219
      %v301 = vunpack.c.l.b16 %v220
      %v302 = vunpack.c.l.b16 %v221
      %v303 = vunpack.c.l.b16 %v222
      %v304 = vunpack.c.l.b16 %v223
      %v305 = vunpack.c.l.b16 %v224
      %v306 = vunpack.c.l.b16 %v225
      %v307 = vunpack.c.l.b16 %v226
      %v308 = vunpack.c.l.b16 %v227
      %v309 = vunpack.c.l.b16 %v228
      %v310 = vunpack.c.l.b16 %v229
      %v311 = vunpack.c.l.b16 %v230
      %v312 = vunpack.c.l.b16 %v231
      %v313 = vunpack.c.l.b16 %v232
      %v314 = vunpack.c.l.b16 %v233
      %v315 = vunpack.c.l.b16 %v234
      %v316 = vunpack.c.l.b16 %v235
      %v317 = vunpack.c.l.b16 %v236
      %v318 = vunpack.c.l.b16 %v237
      %v319 = vunpack.c.l.b16 %v238
      %v320 = vunpack.c.l.b16 %v239
      %v321 = vpack.c.b16 %v290, %v289
      %v322 = vpack.c.b16 %v292, %v291
      %v323 = vpack.c.b16 %v294, %v293
      %v324 = vpack.c.b16 %v296, %v295
      %v325 = vpack.c.b16 %v298, %v297
      %v326 = vpack.c.b16 %v300, %v299
      %v327 = vpack.c.b16 %v302, %v301
      %v328 = vpack.c.b16 %v304, %v303
      %v329 = vpack.c.b16 %v306, %v305
      %v330 = vpack.c.b16 %v308, %v307
      %v331 = vpack.c.b16 %v310, %v309
      %v332 = vpack.c.b16 %v312, %v311
      %v333 = vpack.c.b16 %v314, %v313
      %v334 = vpack.c.b16 %v316, %v315
      %v335 = vpack.c.b16 %v318, %v317
      %v336 = vpack.c.b16 %v320, %v319
      %353 = vmatprep.subr.bf16.mxu0 0
      %354 = vmatpush1.bf16.msra.mxu0 %v328
      %355 = vmatprep.subr.bf16.mxu0 0
      %356 = vmatpush1.bf16.msra.mxu0 %v327
      %357 = vmatprep.subr.bf16.mxu0 0
      %358 = vmatpush1.bf16.msra.mxu0 %v326
      %359 = vmatprep.subr.bf16.mxu0 0
      %360 = vmatpush1.bf16.msra.mxu0 %v325
      %361 = vmatprep.subr.bf16.mxu0 0
      %362 = vmatpush1.bf16.msra.mxu0 %v324
      %363 = vmatprep.subr.bf16.mxu0 0
      %364 = vmatpush1.bf16.msra.mxu0 %v323
      %365 = vmatprep.subr.bf16.mxu0 0
      %366 = vmatpush1.bf16.msra.mxu0 %v322
      %367 = vmatprep.subr.bf16.mxu0 0
      %368 = vmatpush1.bf16.msra.mxu0 %v321
      %369 = vmatprep.subr.bf16.mxu0 0
      %370 = vmatpush2.bf16.msra.mxu0 %v336
      %371 = vmatprep.subr.bf16.mxu0 0
      %372 = vmatpush2.bf16.msra.mxu0 %v335
      %373 = vmatprep.subr.bf16.mxu0 0
      %374 = vmatpush2.bf16.msra.mxu0 %v334
      %375 = vmatprep.subr.bf16.mxu0 0
      %376 = vmatpush2.bf16.msra.mxu0 %v333
      %377 = vmatprep.subr.bf16.mxu0 0
      %378 = vmatpush2.bf16.msra.mxu0 %v332
      %379 = vmatprep.subr.bf16.mxu0 0
      %380 = vmatpush2.bf16.msra.mxu0 %v331
      %381 = vmatprep.subr.bf16.mxu0 0
      %382 = vmatpush2.bf16.msra.mxu0 %v330
      %383 = vmatprep.subr.bf16.mxu0 0
      %384 = vmatpush2.bf16.msra.mxu0 %v329
      %385 = vmatprep.mubr.bf16.mxu0 %v254
      %386 = vmatmul.mubr.bf16.gmra.mxu0 %v253
      %v387 = vpop.f32.mrf.mxu0
      %v388 = vadd.f32 %v245, %v387
      %v389 = vpop.f32.mrf.mxu0
      %v390 = vpop.f32.mrf.mxu0
      %v391 = vadd.f32 %v245, %v390
      %v392 = vpop.f32.mrf.mxu0
      %393 = vdwg.mxu0
      %s394 = sld [smem:[#allocation2]]
      %vm395 = vcmp.ge.f32.partialorder %v388, 0.0
      %vm396 = vcmp.ge.f32.partialorder %v391, 0.0
      %v397 = vstv %s394
      %v398 = vmul.f32 %v397, %v388
      %v399 = vmul.f32 %v397, %v391
      %v400 = vsel %vm395, %v388, %v398
      %v401 = vsel %vm396, %v391, %v399
      %v402 = vpack.c.bf16 %v401, %v400
      %v404 = vunpack.c.l.b16 %v402
      %v405 = vunpack.c.h.b16 %v402
      %v406 = vpack.c.b16 %v404, %v404
      %v407 = vpack.c.b16 %v405, %v405
      %410 = vst [vmem:[%s203] sm:$0xf] %v406
      %411 = vst [vmem:[%s203 + $0x4] sm:$0xf] %v407
      %s412 = smul.u32 2, %s16
      %p413 = scmp.lt.s32.totalorder %s412, 3
      %s414 = scalar_select %p413, %s412, 3
      %s415 = smul.addr %s414, 4
      %s416 = scalar_lea.vmem %s4, %s415
      // Predicated region
      $region37: #{_lambda_.5} parent=35 // pred_check
        %p417 = pneg %p123
      $region38: #{_lambda_.5} parent=35 // pred_check_branch
        %419 = sbr.rel (%p417) target = $region40
      $region39: #{_lambda_.5} parent=35 // pred_region
        %s420 = smul.u32 2, %s16
      $region40: #{_lambda_.5} parent=35 // pred_fallthru
        _
    $region36: #{_lambda_.5} parent=5 // pred_fallthru
      _
    %p421 = scmp.le.s32.totalorder 2, %s11
    // Predicated region
    $region41: #{_lambda_.5} parent=5 // pred_check
      %p422 = pneg %p421
    $region42: #{_lambda_.5} parent=5 // pred_check_branch
      %424 = sbr.rel (%p422) target = $region44
    $region43: #{_lambda_.5} parent=5 // pred_region
      %s425 = ssub.s32 %s11, 2
      // Predicated region
      $region45: #{_lambda_.5} parent=43 // pred_check
        %p426 = pneg %p129
      $region46: #{_lambda_.5} parent=43 // pred_check_branch
        %428 = sbr.rel (%p426) target = $region48
      $region47: #{_lambda_.5} parent=43 // pred_region
        %s429 = smul.u32 2, %s17
        %p430 = scmp.lt.s32.totalorder %s429, 3
        %s431 = scalar_select %p430, %s429, 3
        %s432 = smul.addr %s431, 4
        %s433 = scalar_lea.vmem %s4, %s432
      $region48: #{_lambda_.5} parent=43 // pred_fallthru
        _
    $region44: #{_lambda_.5} parent=5 // pred_fallthru
      _
  $region6: #{_lambda_.5} parent=0 // loop_footer
    %s15 = sadd.s32 1, %s11
  $region7: #{_lambda_.5} parent=0 // loop_footer_branch
    %10 = sbr.rel target = $region3
  $region8: #{_lambda_.5} parent=0 // loop_exit
    _

// kernel: _lambda_.6
$region0: #{_lambda_.6}
  #allocation0 [shape = 'u32[]', space=smem, size = 0x4, offset = 0x4, fixed_abs, tag = 'smem constant byte address 0x4 - core index']
  #allocation1 [shape = 'u32[144,128]{1,0:T(1,128)}', space=vmem, size = 0x12000, scoped, tag = 'internal scratch']
  #allocation2 [shape = 'f32[1]{0:T(128)S(6)}', space=smem, size = 0x200, scoped, tag = 'scoped memory for _lambda_.6']
  %s0 = inlined_call_operand.vmem [shape: bf16[32,36], index: 0, kind: input, shape index: {}]
  %s1 = inlined_call_operand.vmem [shape: bf16[36,128], index: 1, kind: input, shape index: {}]
  %s2 = inlined_call_operand.vmem [shape: f32[1,128], index: 2, kind: input, shape index: {}]
  %s3 = inlined_call_operand.<no memory space> [shape: f32[1], index: 3, kind: input, shape index: {}]
  %s4 = inlined_call_operand.vmem [shape: bf16[32,128], index: 4, kind: output, shape index: {}]
  %s5 = sld [smem:[#allocation0]]
  $region49: #{_lambda_.6} parent=0
    _
  %s7 = ssub.s32 1, %s5
  %s8 = scalar_select 0, %s7, %s5
  %9 = sst [smem:[#allocation2]] %s3
  loop: start=0, step=1, limit=4
  $region2: #{_lambda_.6} parent=0 // loop_pre_header
    _
  $region3: #{_lambda_.6} parent=0 // loop_header
    %s11 = sphi 0, %s15
    %p12 = scmp.ge.s32.totalorder %s11, 4
    %s21 = sphi 0, %s23
    %s24 = sphi 0, %s21
    %s25 = sphi 0, %s24
    %s41 = sphi 0, %s25
    %s45 = sphi 0, %s45
    %s47 = sphi 0, %s45
    %s48 = sphi 0, %s47
    %s62 = sphi 0, %s48
    %s66 = sphi 0, %s66
    %s68 = sphi 0, %s66
    %s69 = sphi 0, %s68
    %s83 = sphi 0, %s69
    %s87 = sphi 0, %s87
    %s89 = sphi 0, %s87
    %s90 = sphi 0, %s89
    %s104 = sphi 0, %s90
    %s110 = sphi 0, %s112
    %s113 = sphi 0, %s110
    %s114 = sphi 0, %s113
    %s130 = sphi 0, %s114
  $region4: #{_lambda_.6} parent=0 // loop_header_branch
    %14 = sbr.rel (%p12) target = $region8
  $region5: #{_lambda_.6} parent=0 // loop_body
    %s16 = ssub.s32 %s11, 1
    %s17 = ssub.s32 %s11, 2
    %s18 = sadd.s32 %s11, 1
    %s19 = ssub.s32 %s11, %s18
    %p20 = scmp.eq.s32.totalorder %s19, 0
    %s22 = sadd.s32 %s21, 1
    %s23 = scalar_select %p20, %s21, %s22
    %p26 = pneg %p20
    %p27 = scmp.eq.s32.totalorder %s11, 1
    %p28 = por %p26, %p27
    %p29 = scmp.ne.s32.totalorder %s21, %s24
    %p30 = scmp.eq.s32.totalorder %s11, 0
    %p31 = por %p29, %p30
    %p32 = scmp.ne.s32.totalorder %s21, %s24
    %p33 = scmp.eq.s32.totalorder %s16, 1
    %p34 = por %p32, %p33
    %p35 = scmp.ne.s32.totalorder %s24, %s25
    %p36 = scmp.eq.s32.totalorder %s16, 0
    %p37 = por %p35, %p36
    %p38 = scmp.ne.s32.totalorder %s24, %s25
    %p39 = scmp.eq.s32.totalorder %s17, 1
    %p40 = por %p38, %p39
    %p42 = scmp.ne.s32.totalorder %s25, %s41
    %p43 = scmp.eq.s32.totalorder %s17, 0
    %p44 = por %p42, %p43
    %s46 = sadd.s32 %s45, 1
    %p49 = scmp.eq.s32.totalorder %s11, 1
    %p50 = scmp.ne.s32.totalorder %s45, %s47
    %p51 = scmp.eq.s32.totalorder %s11, 0
    %p52 = por %p50, %p51
    %p53 = scmp.ne.s32.totalorder %s45, %s47
    %p54 = scmp.eq.s32.totalorder %s16, 1
    %p55 = por %p53, %p54
    %p56 = scmp.ne.s32.totalorder %s47, %s48
    %p57 = scmp.eq.s32.totalorder %s16, 0
    %p58 = por %p56, %p57
    %p59 = scmp.ne.s32.totalorder %s47, %s48
    %p60 = scmp.eq.s32.totalorder %s17, 1
    %p61 = por %p59, %p60
    %p63 = scmp.ne.s32.totalorder %s48, %s62
    %p64 = scmp.eq.s32.totalorder %s17, 0
    %p65 = por %p63, %p64
    %s67 = sadd.s32 %s66, 1
    %p70 = scmp.eq.s32.totalorder %s11, 1
    %p71 = scmp.ne.s32.totalorder %s66, %s68
    %p72 = scmp.eq.s32.totalorder %s11, 0
    %p73 = por %p71, %p72
    %p74 = scmp.ne.s32.totalorder %s66, %s68
    %p75 = scmp.eq.s32.totalorder %s16, 1
    %p76 = por %p74, %p75
    %p77 = scmp.ne.s32.totalorder %s68, %s69
    %p78 = scmp.eq.s32.totalorder %s16, 0
    %p79 = por %p77, %p78
    %p80 = scmp.ne.s32.totalorder %s68, %s69
    %p81 = scmp.eq.s32.totalorder %s17, 1
    %p82 = por %p80, %p81
    %p84 = scmp.ne.s32.totalorder %s69, %s83
    %p85 = scmp.eq.s32.totalorder %s17, 0
    %p86 = por %p84, %p85
    %s88 = sadd.s32 %s87, 1
    %p91 = scmp.eq.s32.totalorder %s11, 1
    %p92 = scmp.ne.s32.totalorder %s87, %s89
    %p93 = scmp.eq.s32.totalorder %s11, 0
    %p94 = por %p92, %p93
    %p95 = scmp.ne.s32.totalorder %s87, %s89
    %p96 = scmp.eq.s32.totalorder %s16, 1
    %p97 = por %p95, %p96
    %p98 = scmp.ne.s32.totalorder %s89, %s90
    %p99 = scmp.eq.s32.totalorder %s16, 0
    %p100 = por %p98, %p99
    %p101 = scmp.ne.s32.totalorder %s89, %s90
    %p102 = scmp.eq.s32.totalorder %s17, 1
    %p103 = por %p101, %p102
    %p105 = scmp.ne.s32.totalorder %s90, %s104
    %p106 = scmp.eq.s32.totalorder %s17, 0
    %p107 = por %p105, %p106
    %s108 = ssub.s32 %s11, %s18
    %p109 = scmp.eq.s32.totalorder %s108, 0
    %s111 = sadd.s32 %s110, 1
    %s112 = scalar_select %p109, %s110, %s111
    %p115 = pneg %p109
    %p116 = scmp.eq.s32.totalorder %s11, 1
    %p117 = por %p115, %p116
    %p118 = scmp.ne.s32.totalorder %s110, %s113
    %p119 = scmp.eq.s32.totalorder %s11, 0
    %p120 = por %p118, %p119
    %p121 = scmp.ne.s32.totalorder %s110, %s113
    %p122 = scmp.eq.s32.totalorder %s16, 1
    %p123 = por %p121, %p122
    %p124 = scmp.ne.s32.totalorder %s113, %s114
    %p125 = scmp.eq.s32.totalorder %s16, 0
    %p126 = por %p124, %p125
    %p127 = scmp.ne.s32.totalorder %s113, %s114
    %p128 = scmp.eq.s32.totalorder %s17, 1
    %p129 = por %p127, %p128
    %p131 = scmp.ne.s32.totalorder %s114, %s130
    %p132 = scmp.eq.s32.totalorder %s17, 0
    %p133 = por %p131, %p132
    %p134 = scmp.le.s32.totalorder 1, %s11
    %p135 = scmp.lt.s32.totalorder %s11, 3
    %p136 = pnand %p134, %p135
    %p137 = pneg %p136
    // Predicated region
    $region9: #{_lambda_.6} parent=5 // pred_check
      _
    $region10: #{_lambda_.6} parent=5 // pred_check_branch
      %139 = sbr.rel (%p136) target = $region12
    $region11: #{_lambda_.6} parent=5 // pred_region
      %s140 = ssub.s32 %s11, 1
      // Predicated region
      $region13: #{_lambda_.6} parent=11 // pred_check
        %p141 = pneg %p58
      $region14: #{_lambda_.6} parent=11 // pred_check_branch
        %143 = sbr.rel (%p141) target = $region16
      $region15: #{_lambda_.6} parent=11 // pred_region
        _
      $region16: #{_lambda_.6} parent=11 // pred_fallthru
        _
      // Predicated region
      $region17: #{_lambda_.6} parent=11 // pred_check
        %p144 = pneg %p79
      $region18: #{_lambda_.6} parent=11 // pred_check_branch
        %146 = sbr.rel (%p144) target = $region20
      $region19: #{_lambda_.6} parent=11 // pred_region
        _
      $region20: #{_lambda_.6} parent=11 // pred_fallthru
        _
      // Predicated region
      $region21: #{_lambda_.6} parent=11 // pred_check
        %p147 = pneg %p100
      $region22: #{_lambda_.6} parent=11 // pred_check_branch
        %149 = sbr.rel (%p147) target = $region24
      $region23: #{_lambda_.6} parent=11 // pred_region
        _
      $region24: #{_lambda_.6} parent=11 // pred_fallthru
        _
    $region12: #{_lambda_.6} parent=5 // pred_fallthru
      _
    %p150 = scmp.lt.s32.totalorder %s11, 2
    // Predicated region
    $region25: #{_lambda_.6} parent=5 // pred_check
      %p151 = pneg %p150
    $region26: #{_lambda_.6} parent=5 // pred_check_branch
      %153 = sbr.rel (%p151) target = $region28
    $region27: #{_lambda_.6} parent=5 // pred_region
      // Predicated region
      $region29: #{_lambda_.6} parent=27 // pred_check
        %p154 = pneg %p31
      $region30: #{_lambda_.6} parent=27 // pred_check_branch
        %156 = sbr.rel (%p154) target = $region32
      $region31: #{_lambda_.6} parent=27 // pred_region
        %s157 = smul.u32 2, %s11
        %p158 = scmp.lt.s32.totalorder %s157, 3
        %s159 = scalar_select %p158, %s157, 3
        %s160 = smul.addr %s159, 4
        %s161 = scalar_lea.vmem %s0, %s160
        %s162 = smul.u32 2, %s11
      $region32: #{_lambda_.6} parent=27 // pred_fallthru
        _
    $region28: #{_lambda_.6} parent=5 // pred_fallthru
      _
    %p163 = scmp.le.s32.totalorder 1, %s11
    %p164 = scmp.lt.s32.totalorder %s11, 3
    %p165 = pnand %p163, %p164
    %p166 = pneg %p165
    // Predicated region
    $region33: #{_lambda_.6} parent=5 // pred_check
      _
    $region34: #{_lambda_.6} parent=5 // pred_check_branch
      %168 = sbr.rel (%p165) target = $region36
    $region35: #{_lambda_.6} parent=5 // pred_region
      %s169 = ssub.s32 %s11, 1
      %s170 = smul.u32 2, %s16
      %p171 = scmp.lt.s32.totalorder %s170, 3
      %s172 = scalar_select %p171, %s170, 3
      %s173 = smul.addr %s172, 4
      %s174 = scalar_lea.vmem %s0, %s173
      %p175 = pneg %p37
      %p176 = pneg %p34
      %p177 = pneg %p58
      %p178 = pneg %p55
      %p179 = pneg %p79
      %p180 = pneg %p76
      %p181 = pneg %p100
      %p182 = pneg %p97
      %p183 = pneg %p126
      %p184 = pneg %p123
      %s185 = smul.u32 2, %s16
      %p186 = scmp.lt.s32.totalorder %s185, 3
      %s187 = scalar_select %p186, %s185, 3
      %s188 = smul.addr %s187, 4
      %s189 = scalar_lea.vmem %s4, %s188
      %s190 = smul.u32 2, %s16
      %p191 = scmp.lt.s32.totalorder %s190, 3
      %s192 = scalar_select %p191, %s190, 3
      %s193 = smul.addr %s192, 4
      %s194 = scalar_lea.vmem %s0, %s193
      %s195 = smul.u32 2, %s16
      %s196 = smul.u32 2, %s16
      %p197 = scmp.lt.s32.totalorder %s196, 3
      %s198 = scalar_select %p197, %s196, 3
      %s199 = smul.addr %s198, 4
      %s200 = scalar_lea.vmem %s4, %s199
      %s201 = smul.u32 2, %s16
      %v203 = vld [vmem:[%s194] sm:$0xf]
      %v204 = vld [vmem:[%s194 + $0x4] sm:$0xf]
      %v205 = vld [vmem:[%s1] sm:$0xf]
      %v206 = vld [vmem:[%s1 + $0x4] sm:$0xf]
      %v207 = vld [vmem:[%s1 + $0x8] sm:$0xf]
      %v208 = vld [vmem:[%s1 + $0xc] sm:$0xf]
      %v209 = vld [vmem:[%s1 + $0x10] sm:$0x3]
      %v210 = vld [vmem:[%s2] sm:$0x1]
      %v212 = vlaneseq
      %v213 = vshrl.u32 %v212, 7
      %v214 = vsub.s32 0, %v213
      %v215 = vrot.slane %v210, %v214
      %v219 = vunpack.c.l.b16 %v203
      %v220 = vunpack.c.l.b16 %v204
      %v221 = vpack.c.b16 %v220, %v219
      %v227 = vunpack.c.l.b16 %v205
      %v228 = vunpack.c.l.b16 %v206
      %v229 = vunpack.c.l.b16 %v207
      %v230 = vunpack.c.l.b16 %v208
      %v231 = vunpack.c.l.b16 %v209
      %v232 = vpack.c.b16 %v228, %v227
      %v233 = vpack.c.b16 %v230, %v229
      %v234 = vpack.c.b16 %v231, %v231
      %vm237 = vcmask 293888
      %v239 = vsel %vm237, %v221, 0
      %vm241 = vcmask 1041408
      %v243 = vsel %vm241, %v234, 0
      %245 = vmatprep.subr.bf16.mxu0 0
      %246 = vmatpush1.bf16.msra.mxu0 0
      %247 = vmatprep.subr.bf16.mxu0 0
      %248 = vmatpush1.bf16.msra.mxu0 0
      %249 = vmatprep.subr.bf16.mxu0 0
      %250 = vmatpush1.bf16.msra.mxu0 0
      %251 = vmatprep.subr.bf16.mxu0 0
      %252 = vmatpush1.bf16.msra.mxu0 0
      %253 = vmatprep.subr.bf16.mxu0 0
      %254 = vmatpush1.bf16.msra.mxu0 0
      %255 = vmatprep.subr.bf16.mxu0 0
      %256 = vmatpush1.bf16.msra.mxu0 %v243
      %257 = vmatprep.subr.bf16.mxu0 0
      %258 = vmatpush1.bf16.msra.mxu0 %v233
      %259 = vmatprep.subr.bf16.mxu0 0
      %260 = vmatpush1.bf16.msra.mxu0 %v232
      %261 = vmatprep.subr.bf16.mxu0 0
      %262 = vmatpush2.bf16.msra.mxu0 0
      %263 = vmatprep.subr.bf16.mxu0 0
      %264 = vmatpush2.bf16.msra.mxu0 0
      %265 = vmatprep.subr.bf16.mxu0 0
      %266 = vmatpush2.bf16.msra.mxu0 0
      %267 = vmatprep.subr.bf16.mxu0 0
      %268 = vmatpush2.bf16.msra.mxu0 0
      %269 = vmatprep.subr.bf16.mxu0 0
      %270 = vmatpush2.bf16.msra.mxu0 0
      %271 = vmatprep.subr.bf16.mxu0 0
      %272 = vmatpush2.bf16.msra.mxu0 0
      %273 = vmatprep.subr.bf16.mxu0 0
      %274 = vmatpush2.bf16.msra.mxu0 0
      %275 = vmatprep.subr.bf16.mxu0 0
      %276 = vmatpush2.bf16.msra.mxu0 0
      %277 = vmatprep.mubr.bf16.mxu0 0
      %278 = vmatmul.mubr.bf16.gmra.mxu0 %v239
      %v279 = vpop.f32.mrf.mxu0
      %v280 = vadd.f32 %v215, %v279
      %v281 = vpop.f32.mrf.mxu0
      %v282 = vpop.f32.mrf.mxu0
      %v283 = vadd.f32 %v215, %v282
      %v284 = vpop.f32.mrf.mxu0
      %285 = vdwg.mxu0
      %s286 = sld [smem:[#allocation2]]
      %vm287 = vcmp.ge.f32.partialorder %v280, 0.0
      %vm288 = vcmp.ge.f32.partialorder %v283, 0.0
      %v289 = vstv %s286
      %v290 = vmul.f32 %v289, %v280
      %v291 = vmul.f32 %v289, %v283
      %v292 = vsel %vm287, %v280, %v290
      %v293 = vsel %vm288, %v283, %v291
      %v294 = vpack.c.bf16 %v293, %v292
      %v296 = vunpack.c.l.b16 %v294
      %v297 = vunpack.c.h.b16 %v294
      %v298 = vpack.c.b16 %v296, %v296
      %v299 = vpack.c.b16 %v297, %v297
      %302 = vst [vmem:[%s200] sm:$0xf] %v298
      %303 = vst [vmem:[%s200 + $0x4] sm:$0xf] %v299
      %s304 = smul.u32 2, %s16
      %p305 = scmp.lt.s32.totalorder %s304, 3
      %s306 = scalar_select %p305, %s304, 3
      %s307 = smul.addr %s306, 4
      %s308 = scalar_lea.vmem %s4, %s307
      // Predicated region
      $region37: #{_lambda_.6} parent=35 // pred_check
        %p309 = pneg %p123
      $region38: #{_lambda_.6} parent=35 // pred_check_branch
        %311 = sbr.rel (%p309) target = $region40
      $region39: #{_lambda_.6} parent=35 // pred_region
        %s312 = smul.u32 2, %s16
      $region40: #{_lambda_.6} parent=35 // pred_fallthru
        _
    $region36: #{_lambda_.6} parent=5 // pred_fallthru
      _
    %p313 = scmp.le.s32.totalorder 2, %s11
    // Predicated region
    $region41: #{_lambda_.6} parent=5 // pred_check
      %p314 = pneg %p313
    $region42: #{_lambda_.6} parent=5 // pred_check_branch
      %316 = sbr.rel (%p314) target = $region44
    $region43: #{_lambda_.6} parent=5 // pred_region
      %s317 = ssub.s32 %s11, 2
      // Predicated region
      $region45: #{_lambda_.6} parent=43 // pred_check
        %p318 = pneg %p129
      $region46: #{_lambda_.6} parent=43 // pred_check_branch
        %320 = sbr.rel (%p318) target = $region48
      $region47: #{_lambda_.6} parent=43 // pred_region
        %s321 = smul.u32 2, %s17
        %p322 = scmp.lt.s32.totalorder %s321, 3
        %s323 = scalar_select %p322, %s321, 3
        %s324 = smul.addr %s323, 4
        %s325 = scalar_lea.vmem %s4, %s324
      $region48: #{_lambda_.6} parent=43 // pred_fallthru
        _
    $region44: #{_lambda_.6} parent=5 // pred_fallthru
      _
  $region6: #{_lambda_.6} parent=0 // loop_footer
    %s15 = sadd.s32 1, %s11
  $region7: #{_lambda_.6} parent=0 // loop_footer_branch
    %10 = sbr.rel target = $region3
  $region8: #{_lambda_.6} parent=0 // loop_exit
    _

// kernel: _lambda_.7
$region0: #{_lambda_.7}
  #allocation0 [shape = 'u32[]', space=smem, size = 0x4, offset = 0x4, fixed_abs, tag = 'smem constant byte address 0x4 - core index']
  #allocation1 [shape = 'u32[144,128]{1,0:T(1,128)}', space=vmem, size = 0x12000, scoped, tag = 'internal scratch']
  #allocation2 [shape = 'f32[1]{0:T(128)S(6)}', space=smem, size = 0x200, scoped, tag = 'scoped memory for _lambda_.7']
  %s0 = inlined_call_operand.vmem [shape: bf16[32,256], index: 0, kind: input, shape index: {}]
  %s1 = inlined_call_operand.vmem [shape: bf16[256,128], index: 1, kind: input, shape index: {}]
  %s2 = inlined_call_operand.vmem [shape: f32[1,128], index: 2, kind: input, shape index: {}]
  %s3 = inlined_call_operand.<no memory space> [shape: f32[1], index: 3, kind: input, shape index: {}]
  %s4 = inlined_call_operand.vmem [shape: bf16[32,128], index: 4, kind: input, shape index: {}]
  %s5 = inlined_call_operand.vmem [shape: f32[32,128], index: 5, kind: output, shape index: {}]
  %s6 = sld [smem:[#allocation0]]
  $region53: #{_lambda_.7} parent=0
    _
  %s8 = ssub.s32 1, %s6
  %s9 = scalar_select 0, %s8, %s6
  %10 = sst [smem:[#allocation2]] %s3
  loop: start=0, step=1, limit=4
  $region2: #{_lambda_.7} parent=0 // loop_pre_header
    _
  $region3: #{_lambda_.7} parent=0 // loop_header
    %s12 = sphi 0, %s16
    %p13 = scmp.ge.s32.totalorder %s12, 4
    %s22 = sphi 0, %s24
    %s25 = sphi 0, %s22
    %s26 = sphi 0, %s25
    %s42 = sphi 0, %s26
    %s46 = sphi 0, %s46
    %s48 = sphi 0, %s46
    %s49 = sphi 0, %s48
    %s63 = sphi 0, %s49
    %s67 = sphi 0, %s67
    %s69 = sphi 0, %s67
    %s70 = sphi 0, %s69
    %s84 = sphi 0, %s70
    %s88 = sphi 0, %s88
    %s90 = sphi 0, %s88
    %s91 = sphi 0, %s90
    %s105 = sphi 0, %s91
    %s111 = sphi 0, %s113
    %s114 = sphi 0, %s111
    %s115 = sphi 0, %s114
    %s131 = sphi 0, %s115
    %s137 = sphi 0, %s139
    %s140 = sphi 0, %s137
    %s141 = sphi 0, %s140
    %s157 = sphi 0, %s141
  $region4: #{_lambda_.7} parent=0 // loop_header_branch
    %15 = sbr.rel (%p13) target = $region8
  $region5: #{_lambda_.7} parent=0 // loop_body
    %s17 = ssub.s32 %s12, 1
    %s18 = ssub.s32 %s12, 2
    %s19 = sadd.s32 %s12, 1
    %s20 = ssub.s32 %s12, %s19
    %p21 = scmp.eq.s32.totalorder %s20, 0
    %s23 = sadd.s32 %s22, 1
    %s24 = scalar_select %p21, %s22, %s23
    %p27 = pneg %p21
    %p28 = scmp.eq.s32.totalorder %s12, 1
    %p29 = por %p27, %p28
    %p30 = scmp.ne.s32.totalorder %s22, %s25
    %p31 = scmp.eq.s32.totalorder %s12, 0
    %p32 = por %p30, %p31
    %p33 = scmp.ne.s32.totalorder %s22, %s25
    %p34 = scmp.eq.s32.totalorder %s17, 1
    %p35 = por %p33, %p34
    %p36 = scmp.ne.s32.totalorder %s25, %s26
    %p37 = scmp.eq.s32.totalorder %s17, 0
    %p38 = por %p36, %p37
    %p39 = scmp.ne.s32.totalorder %s25, %s26
    %p40 = scmp.eq.s32.totalorder %s18, 1
    %p41 = por %p39, %p40
    %p43 = scmp.ne.s32.totalorder %s26, %s42
    %p44 = scmp.eq.s32.totalorder %s18, 0
    %p45 = por %p43, %p44
    %s47 = sadd.s32 %s46, 1
    %p50 = scmp.eq.s32.totalorder %s12, 1
    %p51 = scmp.ne.s32.totalorder %s46, %s48
    %p52 = scmp.eq.s32.totalorder %s12, 0
    %p53 = por %p51, %p52
    %p54 = scmp.ne.s32.totalorder %s46, %s48
    %p55 = scmp.eq.s32.totalorder %s17, 1
    %p56 = por %p54, %p55
    %p57 = scmp.ne.s32.totalorder %s48, %s49
    %p58 = scmp.eq.s32.totalorder %s17, 0
    %p59 = por %p57, %p58
    %p60 = scmp.ne.s32.totalorder %s48, %s49
    %p61 = scmp.eq.s32.totalorder %s18, 1
    %p62 = por %p60, %p61
    %p64 = scmp.ne.s32.totalorder %s49, %s63
    %p65 = scmp.eq.s32.totalorder %s18, 0
    %p66 = por %p64, %p65
    %s68 = sadd.s32 %s67, 1
    %p71 = scmp.eq.s32.totalorder %s12, 1
    %p72 = scmp.ne.s32.totalorder %s67, %s69
    %p73 = scmp.eq.s32.totalorder %s12, 0
    %p74 = por %p72, %p73
    %p75 = scmp.ne.s32.totalorder %s67, %s69
    %p76 = scmp.eq.s32.totalorder %s17, 1
    %p77 = por %p75, %p76
    %p78 = scmp.ne.s32.totalorder %s69, %s70
    %p79 = scmp.eq.s32.totalorder %s17, 0
    %p80 = por %p78, %p79
    %p81 = scmp.ne.s32.totalorder %s69, %s70
    %p82 = scmp.eq.s32.totalorder %s18, 1
    %p83 = por %p81, %p82
    %p85 = scmp.ne.s32.totalorder %s70, %s84
    %p86 = scmp.eq.s32.totalorder %s18, 0
    %p87 = por %p85, %p86
    %s89 = sadd.s32 %s88, 1
    %p92 = scmp.eq.s32.totalorder %s12, 1
    %p93 = scmp.ne.s32.totalorder %s88, %s90
    %p94 = scmp.eq.s32.totalorder %s12, 0
    %p95 = por %p93, %p94
    %p96 = scmp.ne.s32.totalorder %s88, %s90
    %p97 = scmp.eq.s32.totalorder %s17, 1
    %p98 = por %p96, %p97
    %p99 = scmp.ne.s32.totalorder %s90, %s91
    %p100 = scmp.eq.s32.totalorder %s17, 0
    %p101 = por %p99, %p100
    %p102 = scmp.ne.s32.totalorder %s90, %s91
    %p103 = scmp.eq.s32.totalorder %s18, 1
    %p104 = por %p102, %p103
    %p106 = scmp.ne.s32.totalorder %s91, %s105
    %p107 = scmp.eq.s32.totalorder %s18, 0
    %p108 = por %p106, %p107
    %s109 = ssub.s32 %s12, %s19
    %p110 = scmp.eq.s32.totalorder %s109, 0
    %s112 = sadd.s32 %s111, 1
    %s113 = scalar_select %p110, %s111, %s112
    %p116 = pneg %p110
    %p117 = scmp.eq.s32.totalorder %s12, 1
    %p118 = por %p116, %p117
    %p119 = scmp.ne.s32.totalorder %s111, %s114
    %p120 = scmp.eq.s32.totalorder %s12, 0
    %p121 = por %p119, %p120
    %p122 = scmp.ne.s32.totalorder %s111, %s114
    %p123 = scmp.eq.s32.totalorder %s17, 1
    %p124 = por %p122, %p123
    %p125 = scmp.ne.s32.totalorder %s114, %s115
    %p126 = scmp.eq.s32.totalorder %s17, 0
    %p127 = por %p125, %p126
    %p128 = scmp.ne.s32.totalorder %s114, %s115
    %p129 = scmp.eq.s32.totalorder %s18, 1
    %p130 = por %p128, %p129
    %p132 = scmp.ne.s32.totalorder %s115, %s131
    %p133 = scmp.eq.s32.totalorder %s18, 0
    %p134 = por %p132, %p133
    %s135 = ssub.s32 %s12, %s19
    %p136 = scmp.eq.s32.totalorder %s135, 0
    %s138 = sadd.s32 %s137, 1
    %s139 = scalar_select %p136, %s137, %s138
    %p142 = pneg %p136
    %p143 = scmp.eq.s32.totalorder %s12, 1
    %p144 = por %p142, %p143
    %p145 = scmp.ne.s32.totalorder %s137, %s140
    %p146 = scmp.eq.s32.totalorder %s12, 0
    %p147 = por %p145, %p146
    %p148 = scmp.ne.s32.totalorder %s137, %s140
    %p149 = scmp.eq.s32.totalorder %s17, 1
    %p150 = por %p148, %p149
    %p151 = scmp.ne.s32.totalorder %s140, %s141
    %p152 = scmp.eq.s32.totalorder %s17, 0
    %p153 = por %p151, %p152
    %p154 = scmp.ne.s32.totalorder %s140, %s141
    %p155 = scmp.eq.s32.totalorder %s18, 1
    %p156 = por %p154, %p155
    %p158 = scmp.ne.s32.totalorder %s141, %s157
    %p159 = scmp.eq.s32.totalorder %s18, 0
    %p160 = por %p158, %p159
    %p161 = scmp.le.s32.totalorder 1, %s12
    %p162 = scmp.lt.s32.totalorder %s12, 3
    %p163 = pnand %p161, %p162
    %p164 = pneg %p163
    // Predicated region
    $region9: #{_lambda_.7} parent=5 // pred_check
      _
    $region10: #{_lambda_.7} parent=5 // pred_check_branch
      %166 = sbr.rel (%p163) target = $region12
    $region11: #{_lambda_.7} parent=5 // pred_region
      %s167 = ssub.s32 %s12, 1
      // Predicated region
      $region13: #{_lambda_.7} parent=11 // pred_check
        %p168 = pneg %p59
      $region14: #{_lambda_.7} parent=11 // pred_check_branch
        %170 = sbr.rel (%p168) target = $region16
      $region15: #{_lambda_.7} parent=11 // pred_region
        _
      $region16: #{_lambda_.7} parent=11 // pred_fallthru
        _
      // Predicated region
      $region17: #{_lambda_.7} parent=11 // pred_check
        %p171 = pneg %p80
      $region18: #{_lambda_.7} parent=11 // pred_check_branch
        %173 = sbr.rel (%p171) target = $region20
      $region19: #{_lambda_.7} parent=11 // pred_region
        _
      $region20: #{_lambda_.7} parent=11 // pred_fallthru
        _
      // Predicated region
      $region21: #{_lambda_.7} parent=11 // pred_check
        %p174 = pneg %p101
      $region22: #{_lambda_.7} parent=11 // pred_check_branch
        %176 = sbr.rel (%p174) target = $region24
      $region23: #{_lambda_.7} parent=11 // pred_region
        _
      $region24: #{_lambda_.7} parent=11 // pred_fallthru
        _
    $region12: #{_lambda_.7} parent=5 // pred_fallthru
      _
    %p177 = scmp.lt.s32.totalorder %s12, 2
    // Predicated region
    $region25: #{_lambda_.7} parent=5 // pred_check
      %p178 = pneg %p177
    $region26: #{_lambda_.7} parent=5 // pred_check_branch
      %180 = sbr.rel (%p178) target = $region28
    $region27: #{_lambda_.7} parent=5 // pred_region
      // Predicated region
      $region29: #{_lambda_.7} parent=27 // pred_check
        %p181 = pneg %p32
      $region30: #{_lambda_.7} parent=27 // pred_check_branch
        %183 = sbr.rel (%p181) target = $region32
      $region31: #{_lambda_.7} parent=27 // pred_region
        %s184 = smul.u32 2, %s12
        %p185 = scmp.lt.s32.totalorder %s184, 3
        %s186 = scalar_select %p185, %s184, 3
        %s187 = smul.addr %s186, 2
        %s188 = smul.addr %s187, 4
        %s189 = scalar_lea.vmem %s0, %s188
        %s190 = smul.u32 2, %s12
      $region32: #{_lambda_.7} parent=27 // pred_fallthru
        _
      // Predicated region
      $region33: #{_lambda_.7} parent=27 // pred_check
        %p191 = pneg %p121
      $region34: #{_lambda_.7} parent=27 // pred_check_branch
        %193 = sbr.rel (%p191) target = $region36
      $region35: #{_lambda_.7} parent=27 // pred_region
        %s194 = smul.u32 2, %s12
        %p195 = scmp.lt.s32.totalorder %s194, 3
        %s196 = scalar_select %p195, %s194, 3
        %s197 = smul.addr %s196, 4
        %s198 = scalar_lea.vmem %s4, %s197
        %s199 = smul.u32 2, %s12
      $region36: #{_lambda_.7} parent=27 // pred_fallthru
        _
    $region28: #{_lambda_.7} parent=5 // pred_fallthru
      _
    %p200 = scmp.le.s32.totalorder 1, %s12
    %p201 = scmp.lt.s32.totalorder %s12, 3
    %p202 = pnand %p200, %p201
    %p203 = pneg %p202
    // Predicated region
    $region37: #{_lambda_.7} parent=5 // pred_check
      _
    $region38: #{_lambda_.7} parent=5 // pred_check_branch
      %205 = sbr.rel (%p202) target = $region40
    $region39: #{_lambda_.7} parent=5 // pred_region
      %s206 = ssub.s32 %s12, 1
      %s207 = smul.u32 2, %s17
      %p208 = scmp.lt.s32.totalorder %s207, 3
      %s209 = scalar_select %p208, %s207, 3
      %s210 = smul.addr %s209, 2
      %s211 = smul.addr %s210, 4
      %s212 = scalar_lea.vmem %s0, %s211
      %p213 = pneg %p38
      %p214 = pneg %p35
      %p215 = pneg %p59
      %p216 = pneg %p56
      %p217 = pneg %p80
      %p218 = pneg %p77
      %p219 = pneg %p101
      %p220 = pneg %p98
      %s221 = smul.u32 2, %s17
      %p222 = scmp.lt.s32.totalorder %s221, 3
      %s223 = scalar_select %p222, %s221, 3
      %s224 = smul.addr %s223, 4
      %s225 = scalar_lea.vmem %s4, %s224
      %p226 = pneg %p127
      %p227 = pneg %p124
      %p228 = pneg %p153
      %p229 = pneg %p150
      %s230 = smul.u32 2, %s17
      %p231 = scmp.lt.s32.totalorder %s230, 3
      %s232 = scalar_select %p231, %s230, 3
      %s233 = smul.addr %s232, 8
      %s234 = scalar_lea.vmem %s5, %s233
      %s235 = smul.u32 2, %s17
      %p236 = scmp.lt.s32.totalorder %s235, 3
      %s237 = scalar_select %p236, %s235, 3
      %s238 = smul.addr %s237, 2
      %s239 = smul.addr %s238, 4
      %s240 = scalar_lea.vmem %s0, %s239
      %s241 = smul.u32 2, %s17
      %s242 = smul.u32 2, %s17
      %p243 = scmp.lt.s32.totalorder %s242, 3
      %s244 = scalar_select %p243, %s242, 3
      %s245 = smul.addr %s244, 4
      %s246 = scalar_lea.vmem %s4, %s245
      %s247 = smul.u32 2, %s17
      %s248 = smul.u32 2, %s17
      %p249 = scmp.lt.s32.totalorder %s248, 3
      %s250 = scalar_select %p249, %s248, 3
      %s251 = smul.addr %s250, 8
      %s252 = scalar_lea.vmem %s5, %s251
      %s253 = smul.u32 2, %s17
      %v255 = vld [vmem:[%s240] sm:$0xff]
      %v256 = vld [vmem:[%s240 + $0x8] sm:$0xff]
      %v257 = vld [vmem:[%s1] sm:$0xf]
      %v258 = vld [vmem:[%s1 + $0x4] sm:$0xf]
      %v259 = vld [vmem:[%s1 + $0x8] sm:$0xf]
      %v260 = vld [vmem:[%s1 + $0xc] sm:$0xf]
      %v261 = vld [vmem:[%s1 + $0x10] sm:$0xf]
      %v262 = vld [vmem:[%s1 + $0x14] sm:$0xf]
      %v263 = vld [vmem:[%s1 + $0x18] sm:$0xf]
      %v264 = vld [vmem:[%s1 + $0x1c] sm:$0xf]
      %v265 = vld [vmem:[%s1 + $0x20] sm:$0xf]
      %v266 = vld [vmem:[%s1 + $0x24] sm:$0xf]
      %v267 = vld [vmem:[%s1 + $0x28] sm:$0xf]
      %v268 = vld [vmem:[%s1 + $0x2c] sm:$0xf]
      %v269 = vld [vmem:[%s1 + $0x30] sm:$0xf]
      %v270 = vld [vmem:[%s1 + $0x34] sm:$0xf]
      %v271 = vld [vmem:[%s1 + $0x38] sm:$0xf]
      %v272 = vld [vmem:[%s1 + $0x3c] sm:$0xf]
      %v273 = vld [vmem:[%s1 + $0x40] sm:$0xf]
      %v274 = vld [vmem:[%s1 + $0x44] sm:$0xf]
      %v275 = vld [vmem:[%s1 + $0x48] sm:$0xf]
      %v276 = vld [vmem:[%s1 + $0x4c] sm:$0xf]
      %v277 = vld [vmem:[%s1 + $0x50] sm:$0xf]
      %v278 = vld [vmem:[%s1 + $0x54] sm:$0xf]
      %v279 = vld [vmem:[%s1 + $0x58] sm:$0xf]
      %v280 = vld [vmem:[%s1 + $0x5c] sm:$0xf]
      %v281 = vld [vmem:[%s1 + $0x60] sm:$0xf]
      %v282 = vld [vmem:[%s1 + $0x64] sm:$0xf]
      %v283 = vld [vmem:[%s1 + $0x68] sm:$0xf]
      %v284 = vld [vmem:[%s1 + $0x6c] sm:$0xf]
      %v285 = vld [vmem:[%s1 + $0x70] sm:$0xf]
      %v286 = vld [vmem:[%s1 + $0x74] sm:$0xf]
      %v287 = vld [vmem:[%s1 + $0x78] sm:$0xf]
      %v288 = vld [vmem:[%s1 + $0x7c] sm:$0xf]
      %v289 = vld [vmem:[%s2] sm:$0x1]
      %v291 = vlaneseq
      %v292 = vshrl.u32 %v291, 7
      %v293 = vsub.s32 0, %v292
      %v294 = vrot.slane %v289, %v293
      %v298 = vunpack.c.l.b16 %v255
      %v299 = vunpack.c.h.b16 %v255
      %v300 = vunpack.c.l.b16 %v256
      %v301 = vunpack.c.h.b16 %v256
      %v302 = vpack.c.b16 %v300, %v298
      %v303 = vpack.c.b16 %v301, %v299
      %v338 = vunpack.c.l.b16 %v257
      %v339 = vunpack.c.l.b16 %v258
      %v340 = vunpack.c.l.b16 %v259
      %v341 = vunpack.c.l.b16 %v260
      %v342 = vunpack.c.l.b16 %v261
      %v343 = vunpack.c.l.b16 %v262
      %v344 = vunpack.c.l.b16 %v263
      %v345 = vunpack.c.l.b16 %v264
      %v346 = vunpack.c.l.b16 %v265
      %v347 = vunpack.c.l.b16 %v266
      %v348 = vunpack.c.l.b16 %v267
      %v349 = vunpack.c.l.b16 %v268
      %v350 = vunpack.c.l.b16 %v269
      %v351 = vunpack.c.l.b16 %v270
      %v352 = vunpack.c.l.b16 %v271
      %v353 = vunpack.c.l.b16 %v272
      %v354 = vunpack.c.l.b16 %v273
      %v355 = vunpack.c.l.b16 %v274
      %v356 = vunpack.c.l.b16 %v275
      %v357 = vunpack.c.l.b16 %v276
      %v358 = vunpack.c.l.b16 %v277
      %v359 = vunpack.c.l.b16 %v278
      %v360 = vunpack.c.l.b16 %v279
      %v361 = vunpack.c.l.b16 %v280
      %v362 = vunpack.c.l.b16 %v281
      %v363 = vunpack.c.l.b16 %v282
      %v364 = vunpack.c.l.b16 %v283
      %v365 = vunpack.c.l.b16 %v284
      %v366 = vunpack.c.l.b16 %v285
      %v367 = vunpack.c.l.b16 %v286
      %v368 = vunpack.c.l.b16 %v287
      %v369 = vunpack.c.l.b16 %v288
      %v370 = vpack.c.b16 %v339, %v338
      %v371 = vpack.c.b16 %v341, %v340
      %v372 = vpack.c.b16 %v343, %v342
      %v373 = vpack.c.b16 %v345, %v344
      %v374 = vpack.c.b16 %v347, %v346
      %v375 = vpack.c.b16 %v349, %v348
      %v376 = vpack.c.b16 %v351, %v350
      %v377 = vpack.c.b16 %v353, %v352
      %v378 = vpack.c.b16 %v355, %v354
      %v379 = vpack.c.b16 %v357, %v356
      %v380 = vpack.c.b16 %v359, %v358
      %v381 = vpack.c.b16 %v361, %v360
      %v382 = vpack.c.b16 %v363, %v362
      %v383 = vpack.c.b16 %v365, %v364
      %v384 = vpack.c.b16 %v367, %v366
      %v385 = vpack.c.b16 %v369, %v368
      %402 = vmatprep.subr.bf16.mxu0 0
      %403 = vmatpush1.bf16.msra.mxu0 %v377
      %404 = vmatprep.subr.bf16.mxu0 0
      %405 = vmatpush1.bf16.msra.mxu0 %v376
      %406 = vmatprep.subr.bf16.mxu0 0
      %407 = vmatpush1.bf16.msra.mxu0 %v375
      %408 = vmatprep.subr.bf16.mxu0 0
      %409 = vmatpush1.bf16.msra.mxu0 %v374
      %410 = vmatprep.subr.bf16.mxu0 0
      %411 = vmatpush1.bf16.msra.mxu0 %v373
      %412 = vmatprep.subr.bf16.mxu0 0
      %413 = vmatpush1.bf16.msra.mxu0 %v372
      %414 = vmatprep.subr.bf16.mxu0 0
      %415 = vmatpush1.bf16.msra.mxu0 %v371
      %416 = vmatprep.subr.bf16.mxu0 0
      %417 = vmatpush1.bf16.msra.mxu0 %v370
      %418 = vmatprep.subr.bf16.mxu0 0
      %419 = vmatpush2.bf16.msra.mxu0 %v385
      %420 = vmatprep.subr.bf16.mxu0 0
      %421 = vmatpush2.bf16.msra.mxu0 %v384
      %422 = vmatprep.subr.bf16.mxu0 0
      %423 = vmatpush2.bf16.msra.mxu0 %v383
      %424 = vmatprep.subr.bf16.mxu0 0
      %425 = vmatpush2.bf16.msra.mxu0 %v382
      %426 = vmatprep.subr.bf16.mxu0 0
      %427 = vmatpush2.bf16.msra.mxu0 %v381
      %428 = vmatprep.subr.bf16.mxu0 0
      %429 = vmatpush2.bf16.msra.mxu0 %v380
      %430 = vmatprep.subr.bf16.mxu0 0
      %431 = vmatpush2.bf16.msra.mxu0 %v379
      %432 = vmatprep.subr.bf16.mxu0 0
      %433 = vmatpush2.bf16.msra.mxu0 %v378
      %434 = vmatprep.mubr.bf16.mxu0 %v303
      %435 = vmatmul.mubr.bf16.gmra.mxu0 %v302
      %v436 = vpop.f32.mrf.mxu0
      %v437 = vadd.f32 %v294, %v436
      %v438 = vpop.f32.mrf.mxu0
      %v439 = vpop.f32.mrf.mxu0
      %v440 = vadd.f32 %v294, %v439
      %v441 = vpop.f32.mrf.mxu0
      %442 = vdwg.mxu0
      %s443 = sld [smem:[#allocation2]]
      %vm444 = vcmp.ge.f32.partialorder %v437, 0.0
      %vm445 = vcmp.ge.f32.partialorder %v440, 0.0
      %v446 = vstv %s443
      %v447 = vmul.f32 %v446, %v437
      %v448 = vmul.f32 %v446, %v440
      %v449 = vsel %vm444, %v437, %v447
      %v450 = vsel %vm445, %v440, %v448
      %v451 = vld [vmem:[%s246] sm:$0xf]
      %v452 = vld [vmem:[%s246 + $0x4] sm:$0xf]
      %v453 = vunpack.c.l.bf16 %v451
      %v454 = vunpack.c.l.bf16 %v452
      %v455 = vadd.f32 %v449, %v453
      %v456 = vadd.f32 %v450, %v454
      %457 = vst [vmem:[%s252] sm:$0xff] %v455
      %458 = vst [vmem:[%s252 + $0x8] sm:$0xff] %v456
      %s459 = smul.u32 2, %s17
      %p460 = scmp.lt.s32.totalorder %s459, 3
      %s461 = scalar_select %p460, %s459, 3
      %s462 = smul.addr %s461, 8
      %s463 = scalar_lea.vmem %s5, %s462
      // Predicated region
      $region41: #{_lambda_.7} parent=39 // pred_check
        %p464 = pneg %p150
      $region42: #{_lambda_.7} parent=39 // pred_check_branch
        %466 = sbr.rel (%p464) target = $region44
      $region43: #{_lambda_.7} parent=39 // pred_region
        %s467 = smul.u32 2, %s17
      $region44: #{_lambda_.7} parent=39 // pred_fallthru
        _
    $region40: #{_lambda_.7} parent=5 // pred_fallthru
      _
    %p468 = scmp.le.s32.totalorder 2, %s12
    // Predicated region
    $region45: #{_lambda_.7} parent=5 // pred_check
      %p469 = pneg %p468
    $region46: #{_lambda_.7} parent=5 // pred_check_branch
      %471 = sbr.rel (%p469) target = $region48
    $region47: #{_lambda_.7} parent=5 // pred_region
      %s472 = ssub.s32 %s12, 2
      // Predicated region
      $region49: #{_lambda_.7} parent=47 // pred_check
        %p473 = pneg %p156
      $region50: #{_lambda_.7} parent=47 // pred_check_branch
        %475 = sbr.rel (%p473) target = $region52
      $region51: #{_lambda_.7} parent=47 // pred_region
        %s476 = smul.u32 2, %s18
        %p477 = scmp.lt.s32.totalorder %s476, 3
        %s478 = scalar_select %p477, %s476, 3
        %s479 = smul.addr %s478, 8
        %s480 = scalar_lea.vmem %s5, %s479
      $region52: #{_lambda_.7} parent=47 // pred_fallthru
        _
    $region48: #{_lambda_.7} parent=5 // pred_fallthru
      _
  $region6: #{_lambda_.7} parent=0 // loop_footer
    %s16 = sadd.s32 1, %s12
  $region7: #{_lambda_.7} parent=0 // loop_footer_branch
    %11 = sbr.rel target = $region3
  $region8: #{_lambda_.7} parent=0 // loop_exit
    _

</llo_original>
